<compile_context>
chip_gen: v5e
topology: v5e:2x2
jax: 0.10.0
libtpu: 0.0.40
codegen_flags: <defaults>
</compile_context>

<pallas_src>
import functools
import math

import jax
import jax.numpy as jnp
from jax.experimental import pallas as pl
from jax.experimental.pallas import tpu as pltpu


# ----------------------------------------------------------------------------
# Fused kernel: one batch block per grid step
# ----------------------------------------------------------------------------
def _pose_transformer_kernel(
        x_ref, w_in_ref, b_in_ref, pe_ref,
        wqkv_ref, bqkv_ref, wo_ref, bo_ref,
        g1_ref, be1_ref, w1_ref, b1_ref, w2_ref, b2_ref, g2_ref, be2_ref,
        w_out_ref, b_out_ref, o_ref, *, heads, approx_recip):
    Bblk, S, Din = x_ref.shape
    H = w_in_ref.shape[1]
    L = wqkv_ref.shape[0]
    hd = H // heads
    R = Bblk * S
    scale = 1.0 / math.sqrt(hd)
    mm_dtype = wqkv_ref.dtype          # bf16 on the v6e/v7x path, f32 otherwise

    def mm(a, b):
        # cast only at the dot inputs; accumulation and all VPU math stay f32
        return jnp.dot(a.astype(mm_dtype), b.astype(mm_dtype),
                       preferred_element_type=jnp.float32)

    def layer_norm(z, g, b):
        # E[x^2] - mu^2 form: both cross-lane reductions issue back-to-back.
        mu = jnp.mean(z, axis=-1, keepdims=True)
        ms = jnp.mean(z * z, axis=-1, keepdims=True)
        return (z - mu) * jax.lax.rsqrt(ms - mu * mu + 1e-5) * g + b

    # contract last dims of both operands: q @ k^T without an activation .T
    qk_dims = (((1,), (1,)), ((), ()))

    # ---- input projection + positional encoding (PE pre-tiled to (R, H)) ---
    x = x_ref[...].reshape(R, Din)
    h = mm(x, w_in_ref[...]) + b_in_ref[...] + pe_ref[...]          # (R, H)

    # ---- encoder layers (static loop; weights indexed statically) ----------
    for l in range(L):
        qkv = mm(h, wqkv_ref[l]) + bqkv_ref[l]                      # (R, 3H)
        rows = []
        for b in range(Bblk):        # static loop over batch elements in block
            qkv_b = qkv[b * S:(b + 1) * S] if Bblk > 1 else qkv     # (S, 3H)
            heads_out = []
            for hh in range(heads):  # static loop over heads (tiny hd matmuls)
                q = qkv_b[:, hh * hd:(hh + 1) * hd]
                k = qkv_b[:, H + hh * hd:H + (hh + 1) * hd]
                v = qkv_b[:, 2 * H + hh * hd:2 * H + (hh + 1) * hd]
                s = jax.lax.dot_general(
                    q.astype(mm_dtype), k.astype(mm_dtype), qk_dims,
                    preferred_element_type=jnp.float32) * scale
                s = s - jnp.max(s, axis=-1, keepdims=True)
                p = jnp.exp(s)
                p = p * pl.reciprocal(jnp.sum(p, axis=-1, keepdims=True),
                                      approx=approx_recip)
                heads_out.append(mm(p, v))                           # (S, hd)
            rows.append(jnp.concatenate(heads_out, axis=-1))         # (S, H)
        attn_cat = jnp.concatenate(rows, axis=0) if Bblk > 1 else rows[0]
        attn = mm(attn_cat, wo_ref[l]) + bo_ref[l]                   # (R, H)

        # TODO(synk): dropout (p=0.1) is identity in eval mode; not applied.
        h = layer_norm(h + attn, g1_ref[l], be1_ref[l])

        ff = jnp.maximum(mm(h, w1_ref[l]) + b1_ref[l], 0.0)          # (R, F)
        ff = mm(ff, w2_ref[l]) + b2_ref[l]                           # (R, H)
        h = layer_norm(h + ff, g2_ref[l], be2_ref[l])

    # ---- mean-pool over sequence + output projection (lane-dense store) ----
    if Bblk > 1:
        pooled = jnp.mean(h.reshape(Bblk, S, H), axis=1)             # (Bblk, H)
    else:
        pooled = jnp.mean(h, axis=0, keepdims=True)                  # (1, H)
    o_ref[0] = mm(pooled, w_out_ref[...]) + b_out_ref[...]           # (Bblk, Epad)


# ----------------------------------------------------------------------------
# Wrapper: one pallas_call for the full forward pass
# ----------------------------------------------------------------------------
def pose_transformer_forward(x, packed, *, heads, approx_recip=False,
                             block_batch=None):
    B, S, Din = x.shape
    E = packed["emb_dim"]
    Epad = packed["w_out"].shape[1]

    if block_batch is None:
        # Keep >=2 parallel grid steps (v7x has 2 TensorCores) while folding
        # as much batch per step as that allows (fills MXU sublanes).
        n_target = 2 if B >= 2 else 1
        block_batch = max(1, B // n_target)
    n_steps = pl.cdiv(B, block_batch)
    Bpad = n_steps * block_batch
    if Bpad != B:
        x = jnp.pad(x, ((0, Bpad - B), (0, 0), (0, 0)))

    names = ("w_in", "b_in", "pe", "wqkv", "bqkv", "wo", "bo",
             "g1", "be1", "w1", "b1", "w2", "b2", "g2", "be2",
             "w_out", "b_out")
    weights = []
    for n in names:
        a = packed[n]
        if n == "pe":
            a = jnp.tile(a, (block_batch, 1))     # pre-tile PE to (Bblk*S, H)
        weights.append(a)

    def whole(a):
        nd = a.ndim
        return pl.BlockSpec(a.shape, lambda s, _n=nd: (0,) * _n)

    kern = functools.partial(_pose_transformer_kernel,
                             heads=heads, approx_recip=approx_recip)

    out = pl.pallas_call(
        kern,
        out_shape=jax.ShapeDtypeStruct((n_steps, block_batch, Epad),
                                       jnp.float32),
        grid=(n_steps,),
        in_specs=[pl.BlockSpec((block_batch, S, Din), lambda s: (s, 0, 0))]
                 + [whole(a) for a in weights],
        out_specs=pl.BlockSpec((1, block_batch, Epad), lambda s: (s, 0, 0)),
        compiler_params=pltpu.CompilerParams(
            dimension_semantics=("parallel",)),
    )(x, *weights)
    return out.reshape(Bpad, Epad)[:B, :E]


# ----------------------------------------------------------------------------
# Parameter construction (PyTorch layout) + packing for the kernel
# ----------------------------------------------------------------------------
def sinusoidal_pe(seq_len, d_model):
    pos = jnp.arange(seq_len, dtype=jnp.float32)[:, None]
    div = jnp.exp(jnp.arange(0, d_model, 2, dtype=jnp.float32)
                  * (-math.log(10000.0) / d_model))
    ang = pos * div                                   # (S, d_model/2)
    pe = jnp.stack([jnp.sin(ang), jnp.cos(ang)], axis=-1)
    return pe.reshape(seq_len, d_model)               # even=sin, odd=cos


def init_params(key, input_dim, hidden, num_layers, emb_dim, seq_len):
    ff = 4 * hidden

    def lin(k, out_d, in_d, scale=0.05):
        kw, kb = jax.random.split(k)
        w = jax.random.normal(kw, (out_d, in_d), jnp.float32) * scale
        b = jax.random.normal(kb, (1, out_d), jnp.float32) * scale
        return w, b

    keys = jax.random.split(key, 2 + num_layers)
    w_in, b_in = lin(keys[0], hidden, input_dim)
    w_out, b_out = lin(keys[1], emb_dim, hidden)

    layers = []
    for li in range(num_layers):
        ks = jax.random.split(keys[2 + li], 6)
        wq, bq = lin(ks[0], hidden, hidden)
        wk, bk = lin(ks[1], hidden, hidden)
        wv, bv = lin(ks[2], hidden, hidden)
        wo, bo = lin(ks[3], hidden, hidden)
        w1, b1 = lin(ks[4], ff, hidden)
        w2, b2 = lin(ks[5], hidden, ff)
        layers.append(dict(
            wq=wq, bq=bq, wk=wk, bk=bk, wv=wv, bv=bv, wo=wo, bo=bo,
            w1=w1, b1=b1, w2=w2, b2=b2,
            g1=jnp.ones((1, hidden), jnp.float32),
            be1=jnp.zeros((1, hidden), jnp.float32),
            g2=jnp.ones((1, hidden), jnp.float32),
            be2=jnp.zeros((1, hidden), jnp.float32)))

    return dict(w_in=w_in, b_in=b_in, w_out=w_out, b_out=b_out,
                layers=layers, pe=sinusoidal_pe(seq_len, hidden))


def pack_params(params, *, heads, matmul_dtype=jnp.float32, lane=128):
    """PyTorch (out,in) layout -> kernel layout: transposed to (in,out),
    Q/K/V fused along lanes, per-layer stacked, output width lane-padded.
    Matmul-operand weights optionally cast to bf16; LN/bias params stay f32."""
    del heads  # head split happens inside the kernel via lane slicing
    H = params["w_in"].shape[0]
    E = params["w_out"].shape[0]
    Ls = params["layers"]
    mdt = matmul_dtype

    def stack(fn):
        return jnp.stack([fn(lp) for lp in Ls], axis=0)

    Epad = ((E + lane - 1) // lane) * lane
    w_out = params["w_out"].T                         # (H, E)
    b_out = params["b_out"]                           # (1, E)
    if Epad != E:
        w_out = jnp.pad(w_out, ((0, 0), (0, Epad - E)))
        b_out = jnp.pad(b_out, ((0, 0), (0, Epad - E)))

    return dict(
        emb_dim=E,
        w_in=params["w_in"].T.astype(mdt),            # (Din, H)
        b_in=params["b_in"],                          # (1, H)
        pe=params["pe"],                              # (S, H)
        # fused Q/K/V: (L, H, 3H) weights, (L, 1, 3H) biases
        wqkv=stack(lambda lp: jnp.concatenate(
            [lp["wq"].T, lp["wk"].T, lp["wv"].T], axis=1)).astype(mdt),
        bqkv=stack(lambda lp: jnp.concatenate(
            [lp["bq"], lp["bk"], lp["bv"]], axis=1)),
        wo=stack(lambda lp: lp["wo"].T).astype(mdt),  # (L, H, H)
        bo=stack(lambda lp: lp["bo"]),                # (L, 1, H)
        g1=stack(lambda lp: lp["g1"]), be1=stack(lambda lp: lp["be1"]),
        w1=stack(lambda lp: lp["w1"].T).astype(mdt),  # (L, H, F)
        b1=stack(lambda lp: lp["b1"]),                # (L, 1, F)
        w2=stack(lambda lp: lp["w2"].T).astype(mdt),  # (L, F, H)
        b2=stack(lambda lp: lp["b2"]),                # (L, 1, H)
        g2=stack(lambda lp: lp["g2"]), be2=stack(lambda lp: lp["be2"]),
        w_out=w_out.astype(mdt),                      # (H, Epad)
        b_out=b_out,                                  # (1, Epad)
    )


# ----------------------------------------------------------------------------
# Pure-JAX reference (PyTorch layout) for verification
# ----------------------------------------------------------------------------
def reference_forward(x, params, *, heads):
    H = params["w_in"].shape[0]
    hd = H // heads

    def ln(z, g, b):
        mu = z.mean(-1, keepdims=True)
        var = ((z - mu) ** 2).mean(-1, keepdims=True)
        return (z - mu) / jnp.sqrt(var + 1e-5) * g + b

    h = x @ params["w_in"].T + params["b_in"] + params["pe"][None]
    for lp in params["layers"]:
        q = h @ lp["wq"].T + lp["bq"]
        k = h @ lp["wk"].T + lp["bk"]
        v = h @ lp["wv"].T + lp["bv"]
        outs = []
        for hh in range(heads):
            sl = slice(hh * hd, (hh + 1) * hd)
            s = jnp.einsum("bqd,bkd->bqk", q[..., sl], k[..., sl]) / math.sqrt(hd)
            p = jax.nn.softmax(s, axis=-1)
            outs.append(jnp.einsum("bqk,bkd->bqd", p, v[..., sl]))
        attn = jnp.concatenate(outs, axis=-1) @ lp["wo"].T + lp["bo"]
        h1 = ln(h + attn, lp["g1"], lp["be1"])
        f = jnp.maximum(h1 @ lp["w1"].T + lp["b1"], 0.0) @ lp["w2"].T + lp["b2"]
        h = ln(h1 + f, lp["g2"], lp["be2"])
    return h.mean(axis=1) @ params["w_out"].T + params["b_out"]


# ----------------------------------------------------------------------------
if __name__ == "__main__":
    INPUT_DIM, HIDDEN, HEADS, LAYERS, EMB = 12, 32, 4, 2, 64
    BATCH, SEQ = 2, 8

    key = jax.random.PRNGKey(0)
    kx, kp = jax.random.split(key)
    pose_sequence = jax.random.normal(kx, (BATCH, SEQ, INPUT_DIM), jnp.float32)
    params = init_params(kp, INPUT_DIM, HIDDEN, LAYERS, EMB, SEQ)
    ref = reference_forward(pose_sequence, params, heads=HEADS)

    # --- f32-operand path: exact-parity check (1e-4) -----------------------
    packed_f32 = pack_params(params, heads=HEADS, matmul_dtype=jnp.float32)
    out = pose_transformer_forward(pose_sequence, packed_f32, heads=HEADS,
                                   approx_recip=False)
    out = jax.block_until_ready(out)
    assert out.shape == (BATCH, EMB), out.shape
    assert bool(jnp.all(jnp.isfinite(out)))
    err = float(jnp.max(jnp.abs(out - ref)))
    assert bool(jnp.allclose(out, ref, atol=1e-4, rtol=1e-4)), err

    # --- bf16-operand path (single-pass MXU on v6e/v7x), looser tolerance --
    packed_bf16 = pack_params(params, heads=HEADS, matmul_dtype=jnp.bfloat16)
    out_bf = pose_transformer_forward(pose_sequence, packed_bf16, heads=HEADS,
                                      approx_recip=True)
    out_bf = jax.block_until_ready(out_bf)
    assert out_bf.shape == (BATCH, EMB), out_bf.shape
    assert bool(jnp.all(jnp.isfinite(out_bf)))
    err_bf = float(jnp.max(jnp.abs(out_bf - ref)))
    assert err_bf < 5e-2, err_bf

    print("KERNEL_OK")
</pallas_src>

<mosaic_0001>
module attributes {stable_mosaic.version = 11 : i64} {
  func.func @_pose_transformer_kernel(%arg0: i32, %arg1: memref<1x8x12xf32, #tpu.memory_space<vmem>>, %arg2: memref<12x32xf32, #tpu.memory_space<vmem>>, %arg3: memref<1x32xf32, #tpu.memory_space<vmem>>, %arg4: memref<8x32xf32, #tpu.memory_space<vmem>>, %arg5: memref<2x32x96xf32, #tpu.memory_space<vmem>>, %arg6: memref<2x1x96xf32, #tpu.memory_space<vmem>>, %arg7: memref<2x32x32xf32, #tpu.memory_space<vmem>>, %arg8: memref<2x1x32xf32, #tpu.memory_space<vmem>>, %arg9: memref<2x1x32xf32, #tpu.memory_space<vmem>>, %arg10: memref<2x1x32xf32, #tpu.memory_space<vmem>>, %arg11: memref<2x32x128xf32, #tpu.memory_space<vmem>>, %arg12: memref<2x1x128xf32, #tpu.memory_space<vmem>>, %arg13: memref<2x128x32xf32, #tpu.memory_space<vmem>>, %arg14: memref<2x1x32xf32, #tpu.memory_space<vmem>>, %arg15: memref<2x1x32xf32, #tpu.memory_space<vmem>>, %arg16: memref<2x1x32xf32, #tpu.memory_space<vmem>>, %arg17: memref<32x128xf32, #tpu.memory_space<vmem>>, %arg18: memref<1x128xf32, #tpu.memory_space<vmem>>, %arg19: memref<1x1x128xf32, #tpu.memory_space<vmem>>) attributes {dimension_semantics = [#tpu.dimension_semantics<parallel>], iteration_bounds = array<i64: 2>, scalar_prefetch = 0 : i64, scratch_operands = 0 : i64, tpu.core_type = #tpu.core_type<tc>, window_params = [{transform_indices = @transform_0, window_bounds = array<i64: 1, 8, 12>}, {pipeline_mode = #tpu.pipeline_mode<synchronous>, transform_indices = @transform_1, window_bounds = array<i64: 12, 32>}, {pipeline_mode = #tpu.pipeline_mode<synchronous>, transform_indices = @transform_2, window_bounds = array<i64: 1, 32>}, {pipeline_mode = #tpu.pipeline_mode<synchronous>, transform_indices = @transform_3, window_bounds = array<i64: 8, 32>}, {pipeline_mode = #tpu.pipeline_mode<synchronous>, transform_indices = @transform_4, window_bounds = array<i64: 2, 32, 96>}, {pipeline_mode = #tpu.pipeline_mode<synchronous>, transform_indices = @transform_5, window_bounds = array<i64: 2, 1, 96>}, {pipeline_mode = #tpu.pipeline_mode<synchronous>, transform_indices = @transform_6, window_bounds = array<i64: 2, 32, 32>}, {pipeline_mode = #tpu.pipeline_mode<synchronous>, transform_indices = @transform_7, window_bounds = array<i64: 2, 1, 32>}, {pipeline_mode = #tpu.pipeline_mode<synchronous>, transform_indices = @transform_8, window_bounds = array<i64: 2, 1, 32>}, {pipeline_mode = #tpu.pipeline_mode<synchronous>, transform_indices = @transform_9, window_bounds = array<i64: 2, 1, 32>}, {pipeline_mode = #tpu.pipeline_mode<synchronous>, transform_indices = @transform_10, window_bounds = array<i64: 2, 32, 128>}, {pipeline_mode = #tpu.pipeline_mode<synchronous>, transform_indices = @transform_11, window_bounds = array<i64: 2, 1, 128>}, {pipeline_mode = #tpu.pipeline_mode<synchronous>, transform_indices = @transform_12, window_bounds = array<i64: 2, 128, 32>}, {pipeline_mode = #tpu.pipeline_mode<synchronous>, transform_indices = @transform_13, window_bounds = array<i64: 2, 1, 32>}, {pipeline_mode = #tpu.pipeline_mode<synchronous>, transform_indices = @transform_14, window_bounds = array<i64: 2, 1, 32>}, {pipeline_mode = #tpu.pipeline_mode<synchronous>, transform_indices = @transform_15, window_bounds = array<i64: 2, 1, 32>}, {pipeline_mode = #tpu.pipeline_mode<synchronous>, transform_indices = @transform_16, window_bounds = array<i64: 32, 128>}, {pipeline_mode = #tpu.pipeline_mode<synchronous>, transform_indices = @transform_17, window_bounds = array<i64: 1, 128>}, {transform_indices = @transform_18, window_bounds = array<i64: 1, 1, 128>}]} {
    %c0 = arith.constant 0 : index
    %c0_0 = arith.constant 0 : index
    %c0_1 = arith.constant 0 : index
    %0 = vector.load %arg1[%c0, %c0_0, %c0_1] : memref<1x8x12xf32, #tpu.memory_space<vmem>>, vector<1x8x12xf32>
    %1 = vector.shape_cast %0 : vector<1x8x12xf32> to vector<8x12xf32>
    %c0_2 = arith.constant 0 : index
    %c0_3 = arith.constant 0 : index
    %2 = vector.load %arg2[%c0_2, %c0_3] : memref<12x32xf32, #tpu.memory_space<vmem>>, vector<12x32xf32>
    %cst = arith.constant dense<0.000000e+00> : vector<8x32xf32>
    %3 = tpu.matmul %1, %2, %cst {dimension_numbers = #tpu.dot_dimension_numbers<[1], [0], [0], [1], [0, 0, 1, 1], [], []>} : vector<8x12xf32>, vector<12x32xf32>, vector<8x32xf32> -> vector<8x32xf32>
    %c0_4 = arith.constant 0 : index
    %c0_5 = arith.constant 0 : index
    %4 = vector.load %arg3[%c0_4, %c0_5] : memref<1x32xf32, #tpu.memory_space<vmem>>, vector<1x32xf32>
    %5 = vector.broadcast %4 : vector<1x32xf32> to vector<8x32xf32>
    %6 = arith.addf %3, %5 : vector<8x32xf32>
    %c0_6 = arith.constant 0 : index
    %c0_7 = arith.constant 0 : index
    %7 = vector.load %arg4[%c0_6, %c0_7] : memref<8x32xf32, #tpu.memory_space<vmem>>, vector<8x32xf32>
    %8 = arith.addf %6, %7 : vector<8x32xf32>
    %c0_8 = arith.constant 0 : index
    %c0_9 = arith.constant 0 : index
    %c0_10 = arith.constant 0 : index
    %9 = vector.load %arg5[%c0_8, %c0_9, %c0_10] : memref<2x32x96xf32, #tpu.memory_space<vmem>>, vector<1x32x96xf32>
    %10 = vector.shape_cast %9 : vector<1x32x96xf32> to vector<32x96xf32>
    %cst_11 = arith.constant dense<0.000000e+00> : vector<8x96xf32>
    %11 = tpu.matmul %8, %10, %cst_11 {dimension_numbers = #tpu.dot_dimension_numbers<[1], [0], [0], [1], [0, 0, 1, 1], [], []>} : vector<8x32xf32>, vector<32x96xf32>, vector<8x96xf32> -> vector<8x96xf32>
    %c0_12 = arith.constant 0 : index
    %c0_13 = arith.constant 0 : index
    %c0_14 = arith.constant 0 : index
    %12 = vector.load %arg6[%c0_12, %c0_13, %c0_14] : memref<2x1x96xf32, #tpu.memory_space<vmem>>, vector<1x1x96xf32>
    %13 = vector.shape_cast %12 : vector<1x1x96xf32> to vector<1x96xf32>
    %14 = vector.broadcast %13 : vector<1x96xf32> to vector<8x96xf32>
    %15 = arith.addf %11, %14 : vector<8x96xf32>
    %16 = vector.extract_strided_slice %15 {offsets = [0, 0], sizes = [8, 8], strides = [1, 1]} : vector<8x96xf32> to vector<8x8xf32>
    %17 = vector.extract_strided_slice %15 {offsets = [0, 32], sizes = [8, 8], strides = [1, 1]} : vector<8x96xf32> to vector<8x8xf32>
    %18 = vector.extract_strided_slice %15 {offsets = [0, 64], sizes = [8, 8], strides = [1, 1]} : vector<8x96xf32> to vector<8x8xf32>
    %cst_15 = arith.constant dense<0.000000e+00> : vector<8x8xf32>
    %19 = tpu.matmul %16, %17, %cst_15 {dimension_numbers = #tpu.dot_dimension_numbers<[1], [1], [0], [0], [0, 0, 1, 0], [], []>} : vector<8x8xf32>, vector<8x8xf32>, vector<8x8xf32> -> vector<8x8xf32>
    %cst_16 = arith.constant 0.353553385 : f32
    %20 = vector.broadcast %cst_16 : f32 to vector<8x8xf32>
    %21 = arith.mulf %19, %20 : vector<8x8xf32>
    %cst_17 = arith.constant dense<0xFF800000> : vector<8xf32>
    %22 = vector.multi_reduction <maximumf>, %21, %cst_17 [1] : vector<8x8xf32> to vector<8xf32>
    %23 = vector.shape_cast %22 : vector<8xf32> to vector<8x1xf32>
    %24 = vector.broadcast %23 : vector<8x1xf32> to vector<8x8xf32>
    %25 = arith.subf %21, %24 : vector<8x8xf32>
    %26 = math.exp %25 : vector<8x8xf32>
    %cst_18 = arith.constant dense<0.000000e+00> : vector<8xf32>
    %27 = vector.multi_reduction <add>, %26, %cst_18 [1] : vector<8x8xf32> to vector<8xf32>
    %28 = vector.shape_cast %27 : vector<8xf32> to vector<8x1xf32>
    %29 = tpu.reciprocal %28 : vector<8x1xf32> -> vector<8x1xf32>
    %30 = vector.broadcast %29 : vector<8x1xf32> to vector<8x8xf32>
    %31 = arith.mulf %26, %30 : vector<8x8xf32>
    %cst_19 = arith.constant dense<0.000000e+00> : vector<8x8xf32>
    %32 = tpu.matmul %31, %18, %cst_19 {dimension_numbers = #tpu.dot_dimension_numbers<[1], [0], [0], [1], [0, 0, 1, 1], [], []>} : vector<8x8xf32>, vector<8x8xf32>, vector<8x8xf32> -> vector<8x8xf32>
    %33 = vector.extract_strided_slice %15 {offsets = [0, 8], sizes = [8, 8], strides = [1, 1]} : vector<8x96xf32> to vector<8x8xf32>
    %34 = vector.extract_strided_slice %15 {offsets = [0, 40], sizes = [8, 8], strides = [1, 1]} : vector<8x96xf32> to vector<8x8xf32>
    %35 = vector.extract_strided_slice %15 {offsets = [0, 72], sizes = [8, 8], strides = [1, 1]} : vector<8x96xf32> to vector<8x8xf32>
    %cst_20 = arith.constant dense<0.000000e+00> : vector<8x8xf32>
    %36 = tpu.matmul %33, %34, %cst_20 {dimension_numbers = #tpu.dot_dimension_numbers<[1], [1], [0], [0], [0, 0, 1, 0], [], []>} : vector<8x8xf32>, vector<8x8xf32>, vector<8x8xf32> -> vector<8x8xf32>
    %cst_21 = arith.constant 0.353553385 : f32
    %37 = vector.broadcast %cst_21 : f32 to vector<8x8xf32>
    %38 = arith.mulf %36, %37 : vector<8x8xf32>
    %cst_22 = arith.constant dense<0xFF800000> : vector<8xf32>
    %39 = vector.multi_reduction <maximumf>, %38, %cst_22 [1] : vector<8x8xf32> to vector<8xf32>
    %40 = vector.shape_cast %39 : vector<8xf32> to vector<8x1xf32>
    %41 = vector.broadcast %40 : vector<8x1xf32> to vector<8x8xf32>
    %42 = arith.subf %38, %41 : vector<8x8xf32>
    %43 = math.exp %42 : vector<8x8xf32>
    %cst_23 = arith.constant dense<0.000000e+00> : vector<8xf32>
    %44 = vector.multi_reduction <add>, %43, %cst_23 [1] : vector<8x8xf32> to vector<8xf32>
    %45 = vector.shape_cast %44 : vector<8xf32> to vector<8x1xf32>
    %46 = tpu.reciprocal %45 : vector<8x1xf32> -> vector<8x1xf32>
    %47 = vector.broadcast %46 : vector<8x1xf32> to vector<8x8xf32>
    %48 = arith.mulf %43, %47 : vector<8x8xf32>
    %cst_24 = arith.constant dense<0.000000e+00> : vector<8x8xf32>
    %49 = tpu.matmul %48, %35, %cst_24 {dimension_numbers = #tpu.dot_dimension_numbers<[1], [0], [0], [1], [0, 0, 1, 1], [], []>} : vector<8x8xf32>, vector<8x8xf32>, vector<8x8xf32> -> vector<8x8xf32>
    %50 = vector.extract_strided_slice %15 {offsets = [0, 16], sizes = [8, 8], strides = [1, 1]} : vector<8x96xf32> to vector<8x8xf32>
    %51 = vector.extract_strided_slice %15 {offsets = [0, 48], sizes = [8, 8], strides = [1, 1]} : vector<8x96xf32> to vector<8x8xf32>
    %52 = vector.extract_strided_slice %15 {offsets = [0, 80], sizes = [8, 8], strides = [1, 1]} : vector<8x96xf32> to vector<8x8xf32>
    %cst_25 = arith.constant dense<0.000000e+00> : vector<8x8xf32>
    %53 = tpu.matmul %50, %51, %cst_25 {dimension_numbers = #tpu.dot_dimension_numbers<[1], [1], [0], [0], [0, 0, 1, 0], [], []>} : vector<8x8xf32>, vector<8x8xf32>, vector<8x8xf32> -> vector<8x8xf32>
    %cst_26 = arith.constant 0.353553385 : f32
    %54 = vector.broadcast %cst_26 : f32 to vector<8x8xf32>
    %55 = arith.mulf %53, %54 : vector<8x8xf32>
    %cst_27 = arith.constant dense<0xFF800000> : vector<8xf32>
    %56 = vector.multi_reduction <maximumf>, %55, %cst_27 [1] : vector<8x8xf32> to vector<8xf32>
    %57 = vector.shape_cast %56 : vector<8xf32> to vector<8x1xf32>
    %58 = vector.broadcast %57 : vector<8x1xf32> to vector<8x8xf32>
    %59 = arith.subf %55, %58 : vector<8x8xf32>
    %60 = math.exp %59 : vector<8x8xf32>
    %cst_28 = arith.constant dense<0.000000e+00> : vector<8xf32>
    %61 = vector.multi_reduction <add>, %60, %cst_28 [1] : vector<8x8xf32> to vector<8xf32>
    %62 = vector.shape_cast %61 : vector<8xf32> to vector<8x1xf32>
    %63 = tpu.reciprocal %62 : vector<8x1xf32> -> vector<8x1xf32>
    %64 = vector.broadcast %63 : vector<8x1xf32> to vector<8x8xf32>
    %65 = arith.mulf %60, %64 : vector<8x8xf32>
    %cst_29 = arith.constant dense<0.000000e+00> : vector<8x8xf32>
    %66 = tpu.matmul %65, %52, %cst_29 {dimension_numbers = #tpu.dot_dimension_numbers<[1], [0], [0], [1], [0, 0, 1, 1], [], []>} : vector<8x8xf32>, vector<8x8xf32>, vector<8x8xf32> -> vector<8x8xf32>
    %67 = vector.extract_strided_slice %15 {offsets = [0, 24], sizes = [8, 8], strides = [1, 1]} : vector<8x96xf32> to vector<8x8xf32>
    %68 = vector.extract_strided_slice %15 {offsets = [0, 56], sizes = [8, 8], strides = [1, 1]} : vector<8x96xf32> to vector<8x8xf32>
    %69 = vector.extract_strided_slice %15 {offsets = [0, 88], sizes = [8, 8], strides = [1, 1]} : vector<8x96xf32> to vector<8x8xf32>
    %cst_30 = arith.constant dense<0.000000e+00> : vector<8x8xf32>
    %70 = tpu.matmul %67, %68, %cst_30 {dimension_numbers = #tpu.dot_dimension_numbers<[1], [1], [0], [0], [0, 0, 1, 0], [], []>} : vector<8x8xf32>, vector<8x8xf32>, vector<8x8xf32> -> vector<8x8xf32>
    %cst_31 = arith.constant 0.353553385 : f32
    %71 = vector.broadcast %cst_31 : f32 to vector<8x8xf32>
    %72 = arith.mulf %70, %71 : vector<8x8xf32>
    %cst_32 = arith.constant dense<0xFF800000> : vector<8xf32>
    %73 = vector.multi_reduction <maximumf>, %72, %cst_32 [1] : vector<8x8xf32> to vector<8xf32>
    %74 = vector.shape_cast %73 : vector<8xf32> to vector<8x1xf32>
    %75 = vector.broadcast %74 : vector<8x1xf32> to vector<8x8xf32>
    %76 = arith.subf %72, %75 : vector<8x8xf32>
    %77 = math.exp %76 : vector<8x8xf32>
    %cst_33 = arith.constant dense<0.000000e+00> : vector<8xf32>
    %78 = vector.multi_reduction <add>, %77, %cst_33 [1] : vector<8x8xf32> to vector<8xf32>
    %79 = vector.shape_cast %78 : vector<8xf32> to vector<8x1xf32>
    %80 = tpu.reciprocal %79 : vector<8x1xf32> -> vector<8x1xf32>
    %81 = vector.broadcast %80 : vector<8x1xf32> to vector<8x8xf32>
    %82 = arith.mulf %77, %81 : vector<8x8xf32>
    %cst_34 = arith.constant dense<0.000000e+00> : vector<8x8xf32>
    %83 = tpu.matmul %82, %69, %cst_34 {dimension_numbers = #tpu.dot_dimension_numbers<[1], [0], [0], [1], [0, 0, 1, 1], [], []>} : vector<8x8xf32>, vector<8x8xf32>, vector<8x8xf32> -> vector<8x8xf32>
    %84 = tpu.concatenate %32, %49, %66, %83 in 1 : vector<8x8xf32>, vector<8x8xf32>, vector<8x8xf32>, vector<8x8xf32> -> vector<8x32xf32>
    %c0_35 = arith.constant 0 : index
    %c0_36 = arith.constant 0 : index
    %c0_37 = arith.constant 0 : index
    %85 = vector.load %arg7[%c0_35, %c0_36, %c0_37] : memref<2x32x32xf32, #tpu.memory_space<vmem>>, vector<1x32x32xf32>
    %86 = vector.shape_cast %85 : vector<1x32x32xf32> to vector<32x32xf32>
    %cst_38 = arith.constant dense<0.000000e+00> : vector<8x32xf32>
    %87 = tpu.matmul %84, %86, %cst_38 {dimension_numbers = #tpu.dot_dimension_numbers<[1], [0], [0], [1], [0, 0, 1, 1], [], []>} : vector<8x32xf32>, vector<32x32xf32>, vector<8x32xf32> -> vector<8x32xf32>
    %c0_39 = arith.constant 0 : index
    %c0_40 = arith.constant 0 : index
    %c0_41 = arith.constant 0 : index
    %88 = vector.load %arg8[%c0_39, %c0_40, %c0_41] : memref<2x1x32xf32, #tpu.memory_space<vmem>>, vector<1x1x32xf32>
    %89 = vector.shape_cast %88 : vector<1x1x32xf32> to vector<1x32xf32>
    %90 = vector.broadcast %89 : vector<1x32xf32> to vector<8x32xf32>
    %91 = arith.addf %87, %90 : vector<8x32xf32>
    %92 = arith.addf %8, %91 : vector<8x32xf32>
    %c0_42 = arith.constant 0 : index
    %c0_43 = arith.constant 0 : index
    %c0_44 = arith.constant 0 : index
    %93 = vector.load %arg9[%c0_42, %c0_43, %c0_44] : memref<2x1x32xf32, #tpu.memory_space<vmem>>, vector<1x1x32xf32>
    %94 = vector.shape_cast %93 : vector<1x1x32xf32> to vector<1x32xf32>
    %c0_45 = arith.constant 0 : index
    %c0_46 = arith.constant 0 : index
    %c0_47 = arith.constant 0 : index
    %95 = vector.load %arg10[%c0_45, %c0_46, %c0_47] : memref<2x1x32xf32, #tpu.memory_space<vmem>>, vector<1x1x32xf32>
    %96 = vector.shape_cast %95 : vector<1x1x32xf32> to vector<1x32xf32>
    %cst_48 = arith.constant dense<0.000000e+00> : vector<8xf32>
    %97 = vector.multi_reduction <add>, %92, %cst_48 [1] : vector<8x32xf32> to vector<8xf32>
    %98 = vector.shape_cast %97 : vector<8xf32> to vector<8x1xf32>
    %cst_49 = arith.constant 3.200000e+01 : f32
    %99 = vector.broadcast %cst_49 : f32 to vector<8x1xf32>
    %100 = arith.divf %98, %99 : vector<8x1xf32>
    %101 = arith.mulf %92, %92 : vector<8x32xf32>
    %cst_50 = arith.constant dense<0.000000e+00> : vector<8xf32>
    %102 = vector.multi_reduction <add>, %101, %cst_50 [1] : vector<8x32xf32> to vector<8xf32>
    %103 = vector.shape_cast %102 : vector<8xf32> to vector<8x1xf32>
    %cst_51 = arith.constant 3.200000e+01 : f32
    %104 = vector.broadcast %cst_51 : f32 to vector<8x1xf32>
    %105 = arith.divf %103, %104 : vector<8x1xf32>
    %106 = vector.broadcast %100 : vector<8x1xf32> to vector<8x32xf32>
    %107 = arith.subf %92, %106 : vector<8x32xf32>
    %108 = arith.mulf %100, %100 : vector<8x1xf32>
    %109 = arith.subf %105, %108 : vector<8x1xf32>
    %cst_52 = arith.constant 9.99999974E-6 : f32
    %110 = vector.broadcast %cst_52 : f32 to vector<8x1xf32>
    %111 = arith.addf %109, %110 : vector<8x1xf32>
    %112 = math.rsqrt %111 : vector<8x1xf32>
    %113 = vector.broadcast %112 : vector<8x1xf32> to vector<8x32xf32>
    %114 = arith.mulf %107, %113 : vector<8x32xf32>
    %115 = vector.broadcast %94 : vector<1x32xf32> to vector<8x32xf32>
    %116 = arith.mulf %114, %115 : vector<8x32xf32>
    %117 = vector.broadcast %96 : vector<1x32xf32> to vector<8x32xf32>
    %118 = arith.addf %116, %117 : vector<8x32xf32>
    %c0_53 = arith.constant 0 : index
    %c0_54 = arith.constant 0 : index
    %c0_55 = arith.constant 0 : index
    %119 = vector.load %arg11[%c0_53, %c0_54, %c0_55] : memref<2x32x128xf32, #tpu.memory_space<vmem>>, vector<1x32x128xf32>
    %120 = vector.shape_cast %119 : vector<1x32x128xf32> to vector<32x128xf32>
    %cst_56 = arith.constant dense<0.000000e+00> : vector<8x128xf32>
    %121 = tpu.matmul %118, %120, %cst_56 {dimension_numbers = #tpu.dot_dimension_numbers<[1], [0], [0], [1], [0, 0, 1, 1], [], []>} : vector<8x32xf32>, vector<32x128xf32>, vector<8x128xf32> -> vector<8x128xf32>
    %c0_57 = arith.constant 0 : index
    %c0_58 = arith.constant 0 : index
    %c0_59 = arith.constant 0 : index
    %122 = vector.load %arg12[%c0_57, %c0_58, %c0_59] : memref<2x1x128xf32, #tpu.memory_space<vmem>>, vector<1x1x128xf32>
    %123 = vector.shape_cast %122 : vector<1x1x128xf32> to vector<1x128xf32>
    %124 = vector.broadcast %123 : vector<1x128xf32> to vector<8x128xf32>
    %125 = arith.addf %121, %124 : vector<8x128xf32>
    %cst_60 = arith.constant 0.000000e+00 : f32
    %126 = vector.broadcast %cst_60 : f32 to vector<8x128xf32>
    %127 = arith.maximumf %125, %126 : vector<8x128xf32>
    %c0_61 = arith.constant 0 : index
    %c0_62 = arith.constant 0 : index
    %c0_63 = arith.constant 0 : index
    %128 = vector.load %arg13[%c0_61, %c0_62, %c0_63] : memref<2x128x32xf32, #tpu.memory_space<vmem>>, vector<1x128x32xf32>
    %129 = vector.shape_cast %128 : vector<1x128x32xf32> to vector<128x32xf32>
    %cst_64 = arith.constant dense<0.000000e+00> : vector<8x32xf32>
    %130 = tpu.matmul %127, %129, %cst_64 {dimension_numbers = #tpu.dot_dimension_numbers<[1], [0], [0], [1], [0, 0, 1, 1], [], []>} : vector<8x128xf32>, vector<128x32xf32>, vector<8x32xf32> -> vector<8x32xf32>
    %c0_65 = arith.constant 0 : index
    %c0_66 = arith.constant 0 : index
    %c0_67 = arith.constant 0 : index
    %131 = vector.load %arg14[%c0_65, %c0_66, %c0_67] : memref<2x1x32xf32, #tpu.memory_space<vmem>>, vector<1x1x32xf32>
    %132 = vector.shape_cast %131 : vector<1x1x32xf32> to vector<1x32xf32>
    %133 = vector.broadcast %132 : vector<1x32xf32> to vector<8x32xf32>
    %134 = arith.addf %130, %133 : vector<8x32xf32>
    %135 = arith.addf %118, %134 : vector<8x32xf32>
    %c0_68 = arith.constant 0 : index
    %c0_69 = arith.constant 0 : index
    %c0_70 = arith.constant 0 : index
    %136 = vector.load %arg15[%c0_68, %c0_69, %c0_70] : memref<2x1x32xf32, #tpu.memory_space<vmem>>, vector<1x1x32xf32>
    %137 = vector.shape_cast %136 : vector<1x1x32xf32> to vector<1x32xf32>
    %c0_71 = arith.constant 0 : index
    %c0_72 = arith.constant 0 : index
    %c0_73 = arith.constant 0 : index
    %138 = vector.load %arg16[%c0_71, %c0_72, %c0_73] : memref<2x1x32xf32, #tpu.memory_space<vmem>>, vector<1x1x32xf32>
    %139 = vector.shape_cast %138 : vector<1x1x32xf32> to vector<1x32xf32>
    %cst_74 = arith.constant dense<0.000000e+00> : vector<8xf32>
    %140 = vector.multi_reduction <add>, %135, %cst_74 [1] : vector<8x32xf32> to vector<8xf32>
    %141 = vector.shape_cast %140 : vector<8xf32> to vector<8x1xf32>
    %cst_75 = arith.constant 3.200000e+01 : f32
    %142 = vector.broadcast %cst_75 : f32 to vector<8x1xf32>
    %143 = arith.divf %141, %142 : vector<8x1xf32>
    %144 = arith.mulf %135, %135 : vector<8x32xf32>
    %cst_76 = arith.constant dense<0.000000e+00> : vector<8xf32>
    %145 = vector.multi_reduction <add>, %144, %cst_76 [1] : vector<8x32xf32> to vector<8xf32>
    %146 = vector.shape_cast %145 : vector<8xf32> to vector<8x1xf32>
    %cst_77 = arith.constant 3.200000e+01 : f32
    %147 = vector.broadcast %cst_77 : f32 to vector<8x1xf32>
    %148 = arith.divf %146, %147 : vector<8x1xf32>
    %149 = vector.broadcast %143 : vector<8x1xf32> to vector<8x32xf32>
    %150 = arith.subf %135, %149 : vector<8x32xf32>
    %151 = arith.mulf %143, %143 : vector<8x1xf32>
    %152 = arith.subf %148, %151 : vector<8x1xf32>
    %cst_78 = arith.constant 9.99999974E-6 : f32
    %153 = vector.broadcast %cst_78 : f32 to vector<8x1xf32>
    %154 = arith.addf %152, %153 : vector<8x1xf32>
    %155 = math.rsqrt %154 : vector<8x1xf32>
    %156 = vector.broadcast %155 : vector<8x1xf32> to vector<8x32xf32>
    %157 = arith.mulf %150, %156 : vector<8x32xf32>
    %158 = vector.broadcast %137 : vector<1x32xf32> to vector<8x32xf32>
    %159 = arith.mulf %157, %158 : vector<8x32xf32>
    %160 = vector.broadcast %139 : vector<1x32xf32> to vector<8x32xf32>
    %161 = arith.addf %159, %160 : vector<8x32xf32>
    %c1 = arith.constant 1 : index
    %c0_79 = arith.constant 0 : index
    %c0_80 = arith.constant 0 : index
    %162 = vector.load %arg5[%c1, %c0_79, %c0_80] : memref<2x32x96xf32, #tpu.memory_space<vmem>>, vector<1x32x96xf32>
    %163 = vector.shape_cast %162 : vector<1x32x96xf32> to vector<32x96xf32>
    %cst_81 = arith.constant dense<0.000000e+00> : vector<8x96xf32>
    %164 = tpu.matmul %161, %163, %cst_81 {dimension_numbers = #tpu.dot_dimension_numbers<[1], [0], [0], [1], [0, 0, 1, 1], [], []>} : vector<8x32xf32>, vector<32x96xf32>, vector<8x96xf32> -> vector<8x96xf32>
    %c1_82 = arith.constant 1 : index
    %c0_83 = arith.constant 0 : index
    %c0_84 = arith.constant 0 : index
    %165 = vector.load %arg6[%c1_82, %c0_83, %c0_84] : memref<2x1x96xf32, #tpu.memory_space<vmem>>, vector<1x1x96xf32>
    %166 = vector.shape_cast %165 : vector<1x1x96xf32> to vector<1x96xf32>
    %167 = vector.broadcast %166 : vector<1x96xf32> to vector<8x96xf32>
    %168 = arith.addf %164, %167 : vector<8x96xf32>
    %169 = vector.extract_strided_slice %168 {offsets = [0, 0], sizes = [8, 8], strides = [1, 1]} : vector<8x96xf32> to vector<8x8xf32>
    %170 = vector.extract_strided_slice %168 {offsets = [0, 32], sizes = [8, 8], strides = [1, 1]} : vector<8x96xf32> to vector<8x8xf32>
    %171 = vector.extract_strided_slice %168 {offsets = [0, 64], sizes = [8, 8], strides = [1, 1]} : vector<8x96xf32> to vector<8x8xf32>
    %cst_85 = arith.constant dense<0.000000e+00> : vector<8x8xf32>
    %172 = tpu.matmul %169, %170, %cst_85 {dimension_numbers = #tpu.dot_dimension_numbers<[1], [1], [0], [0], [0, 0, 1, 0], [], []>} : vector<8x8xf32>, vector<8x8xf32>, vector<8x8xf32> -> vector<8x8xf32>
    %cst_86 = arith.constant 0.353553385 : f32
    %173 = vector.broadcast %cst_86 : f32 to vector<8x8xf32>
    %174 = arith.mulf %172, %173 : vector<8x8xf32>
    %cst_87 = arith.constant dense<0xFF800000> : vector<8xf32>
    %175 = vector.multi_reduction <maximumf>, %174, %cst_87 [1] : vector<8x8xf32> to vector<8xf32>
    %176 = vector.shape_cast %175 : vector<8xf32> to vector<8x1xf32>
    %177 = vector.broadcast %176 : vector<8x1xf32> to vector<8x8xf32>
    %178 = arith.subf %174, %177 : vector<8x8xf32>
    %179 = math.exp %178 : vector<8x8xf32>
    %cst_88 = arith.constant dense<0.000000e+00> : vector<8xf32>
    %180 = vector.multi_reduction <add>, %179, %cst_88 [1] : vector<8x8xf32> to vector<8xf32>
    %181 = vector.shape_cast %180 : vector<8xf32> to vector<8x1xf32>
    %182 = tpu.reciprocal %181 : vector<8x1xf32> -> vector<8x1xf32>
    %183 = vector.broadcast %182 : vector<8x1xf32> to vector<8x8xf32>
    %184 = arith.mulf %179, %183 : vector<8x8xf32>
    %cst_89 = arith.constant dense<0.000000e+00> : vector<8x8xf32>
    %185 = tpu.matmul %184, %171, %cst_89 {dimension_numbers = #tpu.dot_dimension_numbers<[1], [0], [0], [1], [0, 0, 1, 1], [], []>} : vector<8x8xf32>, vector<8x8xf32>, vector<8x8xf32> -> vector<8x8xf32>
    %186 = vector.extract_strided_slice %168 {offsets = [0, 8], sizes = [8, 8], strides = [1, 1]} : vector<8x96xf32> to vector<8x8xf32>
    %187 = vector.extract_strided_slice %168 {offsets = [0, 40], sizes = [8, 8], strides = [1, 1]} : vector<8x96xf32> to vector<8x8xf32>
    %188 = vector.extract_strided_slice %168 {offsets = [0, 72], sizes = [8, 8], strides = [1, 1]} : vector<8x96xf32> to vector<8x8xf32>
    %cst_90 = arith.constant dense<0.000000e+00> : vector<8x8xf32>
    %189 = tpu.matmul %186, %187, %cst_90 {dimension_numbers = #tpu.dot_dimension_numbers<[1], [1], [0], [0], [0, 0, 1, 0], [], []>} : vector<8x8xf32>, vector<8x8xf32>, vector<8x8xf32> -> vector<8x8xf32>
    %cst_91 = arith.constant 0.353553385 : f32
    %190 = vector.broadcast %cst_91 : f32 to vector<8x8xf32>
    %191 = arith.mulf %189, %190 : vector<8x8xf32>
    %cst_92 = arith.constant dense<0xFF800000> : vector<8xf32>
    %192 = vector.multi_reduction <maximumf>, %191, %cst_92 [1] : vector<8x8xf32> to vector<8xf32>
    %193 = vector.shape_cast %192 : vector<8xf32> to vector<8x1xf32>
    %194 = vector.broadcast %193 : vector<8x1xf32> to vector<8x8xf32>
    %195 = arith.subf %191, %194 : vector<8x8xf32>
    %196 = math.exp %195 : vector<8x8xf32>
    %cst_93 = arith.constant dense<0.000000e+00> : vector<8xf32>
    %197 = vector.multi_reduction <add>, %196, %cst_93 [1] : vector<8x8xf32> to vector<8xf32>
    %198 = vector.shape_cast %197 : vector<8xf32> to vector<8x1xf32>
    %199 = tpu.reciprocal %198 : vector<8x1xf32> -> vector<8x1xf32>
    %200 = vector.broadcast %199 : vector<8x1xf32> to vector<8x8xf32>
    %201 = arith.mulf %196, %200 : vector<8x8xf32>
    %cst_94 = arith.constant dense<0.000000e+00> : vector<8x8xf32>
    %202 = tpu.matmul %201, %188, %cst_94 {dimension_numbers = #tpu.dot_dimension_numbers<[1], [0], [0], [1], [0, 0, 1, 1], [], []>} : vector<8x8xf32>, vector<8x8xf32>, vector<8x8xf32> -> vector<8x8xf32>
    %203 = vector.extract_strided_slice %168 {offsets = [0, 16], sizes = [8, 8], strides = [1, 1]} : vector<8x96xf32> to vector<8x8xf32>
    %204 = vector.extract_strided_slice %168 {offsets = [0, 48], sizes = [8, 8], strides = [1, 1]} : vector<8x96xf32> to vector<8x8xf32>
    %205 = vector.extract_strided_slice %168 {offsets = [0, 80], sizes = [8, 8], strides = [1, 1]} : vector<8x96xf32> to vector<8x8xf32>
    %cst_95 = arith.constant dense<0.000000e+00> : vector<8x8xf32>
    %206 = tpu.matmul %203, %204, %cst_95 {dimension_numbers = #tpu.dot_dimension_numbers<[1], [1], [0], [0], [0, 0, 1, 0], [], []>} : vector<8x8xf32>, vector<8x8xf32>, vector<8x8xf32> -> vector<8x8xf32>
    %cst_96 = arith.constant 0.353553385 : f32
    %207 = vector.broadcast %cst_96 : f32 to vector<8x8xf32>
    %208 = arith.mulf %206, %207 : vector<8x8xf32>
    %cst_97 = arith.constant dense<0xFF800000> : vector<8xf32>
    %209 = vector.multi_reduction <maximumf>, %208, %cst_97 [1] : vector<8x8xf32> to vector<8xf32>
    %210 = vector.shape_cast %209 : vector<8xf32> to vector<8x1xf32>
    %211 = vector.broadcast %210 : vector<8x1xf32> to vector<8x8xf32>
    %212 = arith.subf %208, %211 : vector<8x8xf32>
    %213 = math.exp %212 : vector<8x8xf32>
    %cst_98 = arith.constant dense<0.000000e+00> : vector<8xf32>
    %214 = vector.multi_reduction <add>, %213, %cst_98 [1] : vector<8x8xf32> to vector<8xf32>
    %215 = vector.shape_cast %214 : vector<8xf32> to vector<8x1xf32>
    %216 = tpu.reciprocal %215 : vector<8x1xf32> -> vector<8x1xf32>
    %217 = vector.broadcast %216 : vector<8x1xf32> to vector<8x8xf32>
    %218 = arith.mulf %213, %217 : vector<8x8xf32>
    %cst_99 = arith.constant dense<0.000000e+00> : vector<8x8xf32>
    %219 = tpu.matmul %218, %205, %cst_99 {dimension_numbers = #tpu.dot_dimension_numbers<[1], [0], [0], [1], [0, 0, 1, 1], [], []>} : vector<8x8xf32>, vector<8x8xf32>, vector<8x8xf32> -> vector<8x8xf32>
    %220 = vector.extract_strided_slice %168 {offsets = [0, 24], sizes = [8, 8], strides = [1, 1]} : vector<8x96xf32> to vector<8x8xf32>
    %221 = vector.extract_strided_slice %168 {offsets = [0, 56], sizes = [8, 8], strides = [1, 1]} : vector<8x96xf32> to vector<8x8xf32>
    %222 = vector.extract_strided_slice %168 {offsets = [0, 88], sizes = [8, 8], strides = [1, 1]} : vector<8x96xf32> to vector<8x8xf32>
    %cst_100 = arith.constant dense<0.000000e+00> : vector<8x8xf32>
    %223 = tpu.matmul %220, %221, %cst_100 {dimension_numbers = #tpu.dot_dimension_numbers<[1], [1], [0], [0], [0, 0, 1, 0], [], []>} : vector<8x8xf32>, vector<8x8xf32>, vector<8x8xf32> -> vector<8x8xf32>
    %cst_101 = arith.constant 0.353553385 : f32
    %224 = vector.broadcast %cst_101 : f32 to vector<8x8xf32>
    %225 = arith.mulf %223, %224 : vector<8x8xf32>
    %cst_102 = arith.constant dense<0xFF800000> : vector<8xf32>
    %226 = vector.multi_reduction <maximumf>, %225, %cst_102 [1] : vector<8x8xf32> to vector<8xf32>
    %227 = vector.shape_cast %226 : vector<8xf32> to vector<8x1xf32>
    %228 = vector.broadcast %227 : vector<8x1xf32> to vector<8x8xf32>
    %229 = arith.subf %225, %228 : vector<8x8xf32>
    %230 = math.exp %229 : vector<8x8xf32>
    %cst_103 = arith.constant dense<0.000000e+00> : vector<8xf32>
    %231 = vector.multi_reduction <add>, %230, %cst_103 [1] : vector<8x8xf32> to vector<8xf32>
    %232 = vector.shape_cast %231 : vector<8xf32> to vector<8x1xf32>
    %233 = tpu.reciprocal %232 : vector<8x1xf32> -> vector<8x1xf32>
    %234 = vector.broadcast %233 : vector<8x1xf32> to vector<8x8xf32>
    %235 = arith.mulf %230, %234 : vector<8x8xf32>
    %cst_104 = arith.constant dense<0.000000e+00> : vector<8x8xf32>
    %236 = tpu.matmul %235, %222, %cst_104 {dimension_numbers = #tpu.dot_dimension_numbers<[1], [0], [0], [1], [0, 0, 1, 1], [], []>} : vector<8x8xf32>, vector<8x8xf32>, vector<8x8xf32> -> vector<8x8xf32>
    %237 = tpu.concatenate %185, %202, %219, %236 in 1 : vector<8x8xf32>, vector<8x8xf32>, vector<8x8xf32>, vector<8x8xf32> -> vector<8x32xf32>
    %c1_105 = arith.constant 1 : index
    %c0_106 = arith.constant 0 : index
    %c0_107 = arith.constant 0 : index
    %238 = vector.load %arg7[%c1_105, %c0_106, %c0_107] : memref<2x32x32xf32, #tpu.memory_space<vmem>>, vector<1x32x32xf32>
    %239 = vector.shape_cast %238 : vector<1x32x32xf32> to vector<32x32xf32>
    %cst_108 = arith.constant dense<0.000000e+00> : vector<8x32xf32>
    %240 = tpu.matmul %237, %239, %cst_108 {dimension_numbers = #tpu.dot_dimension_numbers<[1], [0], [0], [1], [0, 0, 1, 1], [], []>} : vector<8x32xf32>, vector<32x32xf32>, vector<8x32xf32> -> vector<8x32xf32>
    %c1_109 = arith.constant 1 : index
    %c0_110 = arith.constant 0 : index
    %c0_111 = arith.constant 0 : index
    %241 = vector.load %arg8[%c1_109, %c0_110, %c0_111] : memref<2x1x32xf32, #tpu.memory_space<vmem>>, vector<1x1x32xf32>
    %242 = vector.shape_cast %241 : vector<1x1x32xf32> to vector<1x32xf32>
    %243 = vector.broadcast %242 : vector<1x32xf32> to vector<8x32xf32>
    %244 = arith.addf %240, %243 : vector<8x32xf32>
    %245 = arith.addf %161, %244 : vector<8x32xf32>
    %c1_112 = arith.constant 1 : index
    %c0_113 = arith.constant 0 : index
    %c0_114 = arith.constant 0 : index
    %246 = vector.load %arg9[%c1_112, %c0_113, %c0_114] : memref<2x1x32xf32, #tpu.memory_space<vmem>>, vector<1x1x32xf32>
    %247 = vector.shape_cast %246 : vector<1x1x32xf32> to vector<1x32xf32>
    %c1_115 = arith.constant 1 : index
    %c0_116 = arith.constant 0 : index
    %c0_117 = arith.constant 0 : index
    %248 = vector.load %arg10[%c1_115, %c0_116, %c0_117] : memref<2x1x32xf32, #tpu.memory_space<vmem>>, vector<1x1x32xf32>
    %249 = vector.shape_cast %248 : vector<1x1x32xf32> to vector<1x32xf32>
    %cst_118 = arith.constant dense<0.000000e+00> : vector<8xf32>
    %250 = vector.multi_reduction <add>, %245, %cst_118 [1] : vector<8x32xf32> to vector<8xf32>
    %251 = vector.shape_cast %250 : vector<8xf32> to vector<8x1xf32>
    %cst_119 = arith.constant 3.200000e+01 : f32
    %252 = vector.broadcast %cst_119 : f32 to vector<8x1xf32>
    %253 = arith.divf %251, %252 : vector<8x1xf32>
    %254 = arith.mulf %245, %245 : vector<8x32xf32>
    %cst_120 = arith.constant dense<0.000000e+00> : vector<8xf32>
    %255 = vector.multi_reduction <add>, %254, %cst_120 [1] : vector<8x32xf32> to vector<8xf32>
    %256 = vector.shape_cast %255 : vector<8xf32> to vector<8x1xf32>
    %cst_121 = arith.constant 3.200000e+01 : f32
    %257 = vector.broadcast %cst_121 : f32 to vector<8x1xf32>
    %258 = arith.divf %256, %257 : vector<8x1xf32>
    %259 = vector.broadcast %253 : vector<8x1xf32> to vector<8x32xf32>
    %260 = arith.subf %245, %259 : vector<8x32xf32>
    %261 = arith.mulf %253, %253 : vector<8x1xf32>
    %262 = arith.subf %258, %261 : vector<8x1xf32>
    %cst_122 = arith.constant 9.99999974E-6 : f32
    %263 = vector.broadcast %cst_122 : f32 to vector<8x1xf32>
    %264 = arith.addf %262, %263 : vector<8x1xf32>
    %265 = math.rsqrt %264 : vector<8x1xf32>
    %266 = vector.broadcast %265 : vector<8x1xf32> to vector<8x32xf32>
    %267 = arith.mulf %260, %266 : vector<8x32xf32>
    %268 = vector.broadcast %247 : vector<1x32xf32> to vector<8x32xf32>
    %269 = arith.mulf %267, %268 : vector<8x32xf32>
    %270 = vector.broadcast %249 : vector<1x32xf32> to vector<8x32xf32>
    %271 = arith.addf %269, %270 : vector<8x32xf32>
    %c1_123 = arith.constant 1 : index
    %c0_124 = arith.constant 0 : index
    %c0_125 = arith.constant 0 : index
    %272 = vector.load %arg11[%c1_123, %c0_124, %c0_125] : memref<2x32x128xf32, #tpu.memory_space<vmem>>, vector<1x32x128xf32>
    %273 = vector.shape_cast %272 : vector<1x32x128xf32> to vector<32x128xf32>
    %cst_126 = arith.constant dense<0.000000e+00> : vector<8x128xf32>
    %274 = tpu.matmul %271, %273, %cst_126 {dimension_numbers = #tpu.dot_dimension_numbers<[1], [0], [0], [1], [0, 0, 1, 1], [], []>} : vector<8x32xf32>, vector<32x128xf32>, vector<8x128xf32> -> vector<8x128xf32>
    %c1_127 = arith.constant 1 : index
    %c0_128 = arith.constant 0 : index
    %c0_129 = arith.constant 0 : index
    %275 = vector.load %arg12[%c1_127, %c0_128, %c0_129] : memref<2x1x128xf32, #tpu.memory_space<vmem>>, vector<1x1x128xf32>
    %276 = vector.shape_cast %275 : vector<1x1x128xf32> to vector<1x128xf32>
    %277 = vector.broadcast %276 : vector<1x128xf32> to vector<8x128xf32>
    %278 = arith.addf %274, %277 : vector<8x128xf32>
    %cst_130 = arith.constant 0.000000e+00 : f32
    %279 = vector.broadcast %cst_130 : f32 to vector<8x128xf32>
    %280 = arith.maximumf %278, %279 : vector<8x128xf32>
    %c1_131 = arith.constant 1 : index
    %c0_132 = arith.constant 0 : index
    %c0_133 = arith.constant 0 : index
    %281 = vector.load %arg13[%c1_131, %c0_132, %c0_133] : memref<2x128x32xf32, #tpu.memory_space<vmem>>, vector<1x128x32xf32>
    %282 = vector.shape_cast %281 : vector<1x128x32xf32> to vector<128x32xf32>
    %cst_134 = arith.constant dense<0.000000e+00> : vector<8x32xf32>
    %283 = tpu.matmul %280, %282, %cst_134 {dimension_numbers = #tpu.dot_dimension_numbers<[1], [0], [0], [1], [0, 0, 1, 1], [], []>} : vector<8x128xf32>, vector<128x32xf32>, vector<8x32xf32> -> vector<8x32xf32>
    %c1_135 = arith.constant 1 : index
    %c0_136 = arith.constant 0 : index
    %c0_137 = arith.constant 0 : index
    %284 = vector.load %arg14[%c1_135, %c0_136, %c0_137] : memref<2x1x32xf32, #tpu.memory_space<vmem>>, vector<1x1x32xf32>
    %285 = vector.shape_cast %284 : vector<1x1x32xf32> to vector<1x32xf32>
    %286 = vector.broadcast %285 : vector<1x32xf32> to vector<8x32xf32>
    %287 = arith.addf %283, %286 : vector<8x32xf32>
    %288 = arith.addf %271, %287 : vector<8x32xf32>
    %c1_138 = arith.constant 1 : index
    %c0_139 = arith.constant 0 : index
    %c0_140 = arith.constant 0 : index
    %289 = vector.load %arg15[%c1_138, %c0_139, %c0_140] : memref<2x1x32xf32, #tpu.memory_space<vmem>>, vector<1x1x32xf32>
    %290 = vector.shape_cast %289 : vector<1x1x32xf32> to vector<1x32xf32>
    %c1_141 = arith.constant 1 : index
    %c0_142 = arith.constant 0 : index
    %c0_143 = arith.constant 0 : index
    %291 = vector.load %arg16[%c1_141, %c0_142, %c0_143] : memref<2x1x32xf32, #tpu.memory_space<vmem>>, vector<1x1x32xf32>
    %292 = vector.shape_cast %291 : vector<1x1x32xf32> to vector<1x32xf32>
    %cst_144 = arith.constant dense<0.000000e+00> : vector<8xf32>
    %293 = vector.multi_reduction <add>, %288, %cst_144 [1] : vector<8x32xf32> to vector<8xf32>
    %294 = vector.shape_cast %293 : vector<8xf32> to vector<8x1xf32>
    %cst_145 = arith.constant 3.200000e+01 : f32
    %295 = vector.broadcast %cst_145 : f32 to vector<8x1xf32>
    %296 = arith.divf %294, %295 : vector<8x1xf32>
    %297 = arith.mulf %288, %288 : vector<8x32xf32>
    %cst_146 = arith.constant dense<0.000000e+00> : vector<8xf32>
    %298 = vector.multi_reduction <add>, %297, %cst_146 [1] : vector<8x32xf32> to vector<8xf32>
    %299 = vector.shape_cast %298 : vector<8xf32> to vector<8x1xf32>
    %cst_147 = arith.constant 3.200000e+01 : f32
    %300 = vector.broadcast %cst_147 : f32 to vector<8x1xf32>
    %301 = arith.divf %299, %300 : vector<8x1xf32>
    %302 = vector.broadcast %296 : vector<8x1xf32> to vector<8x32xf32>
    %303 = arith.subf %288, %302 : vector<8x32xf32>
    %304 = arith.mulf %296, %296 : vector<8x1xf32>
    %305 = arith.subf %301, %304 : vector<8x1xf32>
    %cst_148 = arith.constant 9.99999974E-6 : f32
    %306 = vector.broadcast %cst_148 : f32 to vector<8x1xf32>
    %307 = arith.addf %305, %306 : vector<8x1xf32>
    %308 = math.rsqrt %307 : vector<8x1xf32>
    %309 = vector.broadcast %308 : vector<8x1xf32> to vector<8x32xf32>
    %310 = arith.mulf %303, %309 : vector<8x32xf32>
    %311 = vector.broadcast %290 : vector<1x32xf32> to vector<8x32xf32>
    %312 = arith.mulf %310, %311 : vector<8x32xf32>
    %313 = vector.broadcast %292 : vector<1x32xf32> to vector<8x32xf32>
    %314 = arith.addf %312, %313 : vector<8x32xf32>
    %cst_149 = arith.constant dense<0.000000e+00> : vector<32xf32>
    %315 = vector.multi_reduction <add>, %314, %cst_149 [0] : vector<8x32xf32> to vector<32xf32>
    %316 = vector.shape_cast %315 : vector<32xf32> to vector<1x32xf32>
    %cst_150 = arith.constant 8.000000e+00 : f32
    %317 = vector.broadcast %cst_150 : f32 to vector<1x32xf32>
    %318 = arith.divf %316, %317 : vector<1x32xf32>
    %c0_151 = arith.constant 0 : index
    %c0_152 = arith.constant 0 : index
    %319 = vector.load %arg17[%c0_151, %c0_152] : memref<32x128xf32, #tpu.memory_space<vmem>>, vector<32x128xf32>
    %cst_153 = arith.constant dense<0.000000e+00> : vector<1x128xf32>
    %320 = tpu.matmul %318, %319, %cst_153 {dimension_numbers = #tpu.dot_dimension_numbers<[1], [0], [0], [1], [0, 0, 1, 1], [], []>} : vector<1x32xf32>, vector<32x128xf32>, vector<1x128xf32> -> vector<1x128xf32>
    %c0_154 = arith.constant 0 : index
    %c0_155 = arith.constant 0 : index
    %321 = vector.load %arg18[%c0_154, %c0_155] : memref<1x128xf32, #tpu.memory_space<vmem>>, vector<1x128xf32>
    %322 = arith.addf %320, %321 : vector<1x128xf32>
    %c0_156 = arith.constant 0 : index
    %c0_157 = arith.constant 0 : index
    %c0_158 = arith.constant 0 : index
    %323 = vector.load %arg19[%c0_156, %c0_157, %c0_158] : memref<1x1x128xf32, #tpu.memory_space<vmem>>, vector<1x1x128xf32>
    %324 = vector.shape_cast %323 : vector<1x1x128xf32> to vector<1x128xf32>
    %325 = vector.shape_cast %322 : vector<1x128xf32> to vector<1x1x128xf32>
    tpu.vector_store %arg19[%c0_156, %c0_157, %c0_158], %325 {strides = array<i32>} : memref<1x1x128xf32, #tpu.memory_space<vmem>>, vector<1x1x128xf32>,
    return
  }
  func.func @transform_0(%arg0: i32) -> (i32, i32, i32) {
    %c0_i32 = arith.constant 0 : i32
    %c0_i32_0 = arith.constant 0 : i32
    %c0_i32_1 = arith.constant 0 : i32
    return %arg0, %c0_i32, %c0_i32_0 : i32, i32, i32
  }
  func.func @transform_1(%arg0: i32) -> (i32, i32) {
    %c0_i32 = arith.constant 0 : i32
    %c0_i32_0 = arith.constant 0 : i32
    %c0_i32_1 = arith.constant 0 : i32
    return %c0_i32, %c0_i32_0 : i32, i32
  }
  func.func @transform_2(%arg0: i32) -> (i32, i32) {
    %c0_i32 = arith.constant 0 : i32
    %c0_i32_0 = arith.constant 0 : i32
    %c0_i32_1 = arith.constant 0 : i32
    return %c0_i32, %c0_i32_0 : i32, i32
  }
  func.func @transform_3(%arg0: i32) -> (i32, i32) {
    %c0_i32 = arith.constant 0 : i32
    %c0_i32_0 = arith.constant 0 : i32
    %c0_i32_1 = arith.constant 0 : i32
    return %c0_i32, %c0_i32_0 : i32, i32
  }
  func.func @transform_4(%arg0: i32) -> (i32, i32, i32) {
    %c0_i32 = arith.constant 0 : i32
    %c0_i32_0 = arith.constant 0 : i32
    %c0_i32_1 = arith.constant 0 : i32
    %c0_i32_2 = arith.constant 0 : i32
    return %c0_i32, %c0_i32_0, %c0_i32_1 : i32, i32, i32
  }
  func.func @transform_5(%arg0: i32) -> (i32, i32, i32) {
    %c0_i32 = arith.constant 0 : i32
    %c0_i32_0 = arith.constant 0 : i32
    %c0_i32_1 = arith.constant 0 : i32
    %c0_i32_2 = arith.constant 0 : i32
    return %c0_i32, %c0_i32_0, %c0_i32_1 : i32, i32, i32
  }
  func.func @transform_6(%arg0: i32) -> (i32, i32, i32) {
    %c0_i32 = arith.constant 0 : i32
    %c0_i32_0 = arith.constant 0 : i32
    %c0_i32_1 = arith.constant 0 : i32
    %c0_i32_2 = arith.constant 0 : i32
    return %c0_i32, %c0_i32_0, %c0_i32_1 : i32, i32, i32
  }
  func.func @transform_7(%arg0: i32) -> (i32, i32, i32) {
    %c0_i32 = arith.constant 0 : i32
    %c0_i32_0 = arith.constant 0 : i32
    %c0_i32_1 = arith.constant 0 : i32
    %c0_i32_2 = arith.constant 0 : i32
    return %c0_i32, %c0_i32_0, %c0_i32_1 : i32, i32, i32
  }
  func.func @transform_8(%arg0: i32) -> (i32, i32, i32) {
    %c0_i32 = arith.constant 0 : i32
    %c0_i32_0 = arith.constant 0 : i32
    %c0_i32_1 = arith.constant 0 : i32
    %c0_i32_2 = arith.constant 0 : i32
    return %c0_i32, %c0_i32_0, %c0_i32_1 : i32, i32, i32
  }
  func.func @transform_9(%arg0: i32) -> (i32, i32, i32) {
    %c0_i32 = arith.constant 0 : i32
    %c0_i32_0 = arith.constant 0 : i32
    %c0_i32_1 = arith.constant 0 : i32
    %c0_i32_2 = arith.constant 0 : i32
    return %c0_i32, %c0_i32_0, %c0_i32_1 : i32, i32, i32
  }
  func.func @transform_10(%arg0: i32) -> (i32, i32, i32) {
    %c0_i32 = arith.constant 0 : i32
    %c0_i32_0 = arith.constant 0 : i32
    %c0_i32_1 = arith.constant 0 : i32
    %c0_i32_2 = arith.constant 0 : i32
    return %c0_i32, %c0_i32_0, %c0_i32_1 : i32, i32, i32
  }
  func.func @transform_11(%arg0: i32) -> (i32, i32, i32) {
    %c0_i32 = arith.constant 0 : i32
    %c0_i32_0 = arith.constant 0 : i32
    %c0_i32_1 = arith.constant 0 : i32
    %c0_i32_2 = arith.constant 0 : i32
    return %c0_i32, %c0_i32_0, %c0_i32_1 : i32, i32, i32
  }
  func.func @transform_12(%arg0: i32) -> (i32, i32, i32) {
    %c0_i32 = arith.constant 0 : i32
    %c0_i32_0 = arith.constant 0 : i32
    %c0_i32_1 = arith.constant 0 : i32
    %c0_i32_2 = arith.constant 0 : i32
    return %c0_i32, %c0_i32_0, %c0_i32_1 : i32, i32, i32
  }
  func.func @transform_13(%arg0: i32) -> (i32, i32, i32) {
    %c0_i32 = arith.constant 0 : i32
    %c0_i32_0 = arith.constant 0 : i32
    %c0_i32_1 = arith.constant 0 : i32
    %c0_i32_2 = arith.constant 0 : i32
    return %c0_i32, %c0_i32_0, %c0_i32_1 : i32, i32, i32
  }
  func.func @transform_14(%arg0: i32) -> (i32, i32, i32) {
    %c0_i32 = arith.constant 0 : i32
    %c0_i32_0 = arith.constant 0 : i32
    %c0_i32_1 = arith.constant 0 : i32
    %c0_i32_2 = arith.constant 0 : i32
    return %c0_i32, %c0_i32_0, %c0_i32_1 : i32, i32, i32
  }
  func.func @transform_15(%arg0: i32) -> (i32, i32, i32) {
    %c0_i32 = arith.constant 0 : i32
    %c0_i32_0 = arith.constant 0 : i32
    %c0_i32_1 = arith.constant 0 : i32
    %c0_i32_2 = arith.constant 0 : i32
    return %c0_i32, %c0_i32_0, %c0_i32_1 : i32, i32, i32
  }
  func.func @transform_16(%arg0: i32) -> (i32, i32) {
    %c0_i32 = arith.constant 0 : i32
    %c0_i32_0 = arith.constant 0 : i32
    %c0_i32_1 = arith.constant 0 : i32
    return %c0_i32, %c0_i32_0 : i32, i32
  }
  func.func @transform_17(%arg0: i32) -> (i32, i32) {
    %c0_i32 = arith.constant 0 : i32
    %c0_i32_0 = arith.constant 0 : i32
    %c0_i32_1 = arith.constant 0 : i32
    return %c0_i32, %c0_i32_0 : i32, i32
  }
  func.func @transform_18(%arg0: i32) -> (i32, i32, i32) {
    %c0_i32 = arith.constant 0 : i32
    %c0_i32_0 = arith.constant 0 : i32
    %c0_i32_1 = arith.constant 0 : i32
    return %arg0, %c0_i32, %c0_i32_0 : i32, i32, i32
  }
}

</mosaic_0001>

<llo_original>
// kernel: tpu_custom_call.1
$region0: #{tpu_custom_call.1}
  #allocation0 [shape = 'u32[]', space=smem, size = 0x4, offset = 0x4, fixed_abs, tag = 'smem constant byte address 0x4 - core index']
  #allocation1 [shape = 'u32[72,128]{1,0:T(1,128)}', space=vmem, size = 0x9000, scoped, tag = 'internal scratch']
  %s0 = inlined_call_operand.vmem [shape: f32[2,8,12], index: 0, kind: input, shape index: {}]
  %s1 = inlined_call_operand.vmem [shape: f32[12,32], index: 1, kind: input, shape index: {}]
  %s2 = inlined_call_operand.vmem [shape: f32[1,32], index: 2, kind: input, shape index: {}]
  %s3 = inlined_call_operand.vmem [shape: f32[8,32], index: 3, kind: input, shape index: {}]
  %s4 = inlined_call_operand.vmem [shape: f32[2,32,96], index: 4, kind: input, shape index: {}]
  %s5 = inlined_call_operand.vmem [shape: f32[2,1,96], index: 5, kind: input, shape index: {}]
  %s6 = inlined_call_operand.vmem [shape: f32[2,32,32], index: 6, kind: input, shape index: {}]
  %s7 = inlined_call_operand.vmem [shape: f32[2,1,32], index: 7, kind: input, shape index: {}]
  %s8 = inlined_call_operand.vmem [shape: f32[2,1,32], index: 8, kind: input, shape index: {}]
  %s9 = inlined_call_operand.vmem [shape: f32[2,1,32], index: 9, kind: input, shape index: {}]
  %s10 = inlined_call_operand.vmem [shape: f32[2,32,128], index: 10, kind: input, shape index: {}]
  %s11 = inlined_call_operand.vmem [shape: f32[2,1,128], index: 11, kind: input, shape index: {}]
  %s12 = inlined_call_operand.vmem [shape: f32[2,128,32], index: 12, kind: input, shape index: {}]
  %s13 = inlined_call_operand.vmem [shape: f32[2,1,32], index: 13, kind: input, shape index: {}]
  %s14 = inlined_call_operand.vmem [shape: f32[2,1,32], index: 14, kind: input, shape index: {}]
  %s15 = inlined_call_operand.vmem [shape: f32[2,1,32], index: 15, kind: input, shape index: {}]
  %s16 = inlined_call_operand.vmem [shape: f32[32,128], index: 16, kind: input, shape index: {}]
  %s17 = inlined_call_operand.vmem [shape: f32[1,128], index: 17, kind: input, shape index: {}]
  %s18 = inlined_call_operand.hbm [shape: f32[2,1,128], index: 18, kind: output, shape index: {}]
  %s19 = sld [smem:[#allocation0]]
  $region105: #{tpu_custom_call.1} parent=0
    _
  %s21 = ssub.s32 1, %s19
  %s22 = scalar_select 0, %s21, %s19
  $region1: #{tpu_custom_call.1} parent=0
    #allocation2 [shape = 'u8[1024]{0}', space=vmem, size = 0x400, scoped, tag = 'output window, operand 0']
    #allocation3 [shape = 's32[2]{0}', space=sflag, size = 0x8, scoped, tag = 'scoped memory for tpu_custom_call.1']
    %23 = vsyncpa [#allocation3], 0
    %s24 = scalar_lea.sflag [#allocation3], 1
    %25 = vsyncpa %s24, 0
    loop: start=0, step=1, limit=4
    $region2: #{tpu_custom_call.1} parent=1 // loop_pre_header
      _
    $region3: #{tpu_custom_call.1} parent=1 // loop_header
      %s27 = sphi 0, %s31
      %p28 = scmp.ge.s32.totalorder %s27, 4
      %s37 = sphi 0, %s39
      %s40 = sphi 0, %s37
      %s41 = sphi 0, %s40
      %s57 = sphi 0, %s41
      %s61 = sphi 0, %s61
      %s63 = sphi 0, %s61
      %s64 = sphi 0, %s63
      %s78 = sphi 0, %s64
      %s82 = sphi 0, %s82
      %s84 = sphi 0, %s82
      %s85 = sphi 0, %s84
      %s99 = sphi 0, %s85
      %s103 = sphi 0, %s103
      %s105 = sphi 0, %s103
      %s106 = sphi 0, %s105
      %s120 = sphi 0, %s106
      %s124 = sphi 0, %s124
      %s126 = sphi 0, %s124
      %s127 = sphi 0, %s126
      %s141 = sphi 0, %s127
      %s145 = sphi 0, %s145
      %s147 = sphi 0, %s145
      %s148 = sphi 0, %s147
      %s162 = sphi 0, %s148
      %s166 = sphi 0, %s166
      %s168 = sphi 0, %s166
      %s169 = sphi 0, %s168
      %s183 = sphi 0, %s169
      %s187 = sphi 0, %s187
      %s189 = sphi 0, %s187
      %s190 = sphi 0, %s189
      %s204 = sphi 0, %s190
      %s208 = sphi 0, %s208
      %s210 = sphi 0, %s208
      %s211 = sphi 0, %s210
      %s225 = sphi 0, %s211
      %s229 = sphi 0, %s229
      %s231 = sphi 0, %s229
      %s232 = sphi 0, %s231
      %s246 = sphi 0, %s232
      %s250 = sphi 0, %s250
      %s252 = sphi 0, %s250
      %s253 = sphi 0, %s252
      %s267 = sphi 0, %s253
      %s271 = sphi 0, %s271
      %s273 = sphi 0, %s271
      %s274 = sphi 0, %s273
      %s288 = sphi 0, %s274
      %s292 = sphi 0, %s292
      %s294 = sphi 0, %s292
      %s295 = sphi 0, %s294
      %s309 = sphi 0, %s295
      %s313 = sphi 0, %s313
      %s315 = sphi 0, %s313
      %s316 = sphi 0, %s315
      %s330 = sphi 0, %s316
      %s334 = sphi 0, %s334
      %s336 = sphi 0, %s334
      %s337 = sphi 0, %s336
      %s351 = sphi 0, %s337
      %s355 = sphi 0, %s355
      %s357 = sphi 0, %s355
      %s358 = sphi 0, %s357
      %s372 = sphi 0, %s358
      %s376 = sphi 0, %s376
      %s378 = sphi 0, %s376
      %s379 = sphi 0, %s378
      %s393 = sphi 0, %s379
      %s397 = sphi 0, %s397
      %s399 = sphi 0, %s397
      %s400 = sphi 0, %s399
      %s414 = sphi 0, %s400
      %s420 = sphi 0, %s422
      %s423 = sphi 0, %s420
      %s424 = sphi 0, %s423
      %s440 = sphi 0, %s424
    $region4: #{tpu_custom_call.1} parent=1 // loop_header_branch
      %30 = sbr.rel (%p28) target = $region8
    $region5: #{tpu_custom_call.1} parent=1 // loop_body
      %s32 = ssub.s32 %s27, 1
      %s33 = ssub.s32 %s27, 2
      %s34 = sadd.s32 %s27, 1
      %s35 = ssub.s32 %s27, %s34
      %p36 = scmp.eq.s32.totalorder %s35, 0
      %s38 = sadd.s32 %s37, 1
      %s39 = scalar_select %p36, %s37, %s38
      %p42 = pneg %p36
      %p43 = scmp.eq.s32.totalorder %s27, 1
      %p44 = por %p42, %p43
      %p45 = scmp.ne.s32.totalorder %s37, %s40
      %p46 = scmp.eq.s32.totalorder %s27, 0
      %p47 = por %p45, %p46
      %p48 = scmp.ne.s32.totalorder %s37, %s40
      %p49 = scmp.eq.s32.totalorder %s32, 1
      %p50 = por %p48, %p49
      %p51 = scmp.ne.s32.totalorder %s40, %s41
      %p52 = scmp.eq.s32.totalorder %s32, 0
      %p53 = por %p51, %p52
      %p54 = scmp.ne.s32.totalorder %s40, %s41
      %p55 = scmp.eq.s32.totalorder %s33, 1
      %p56 = por %p54, %p55
      %p58 = scmp.ne.s32.totalorder %s41, %s57
      %p59 = scmp.eq.s32.totalorder %s33, 0
      %p60 = por %p58, %p59
      %s62 = sadd.s32 %s61, 1
      %p65 = scmp.eq.s32.totalorder %s27, 1
      %p66 = scmp.ne.s32.totalorder %s61, %s63
      %p67 = scmp.eq.s32.totalorder %s27, 0
      %p68 = por %p66, %p67
      %p69 = scmp.ne.s32.totalorder %s61, %s63
      %p70 = scmp.eq.s32.totalorder %s32, 1
      %p71 = por %p69, %p70
      %p72 = scmp.ne.s32.totalorder %s63, %s64
      %p73 = scmp.eq.s32.totalorder %s32, 0
      %p74 = por %p72, %p73
      %p75 = scmp.ne.s32.totalorder %s63, %s64
      %p76 = scmp.eq.s32.totalorder %s33, 1
      %p77 = por %p75, %p76
      %p79 = scmp.ne.s32.totalorder %s64, %s78
      %p80 = scmp.eq.s32.totalorder %s33, 0
      %p81 = por %p79, %p80
      %s83 = sadd.s32 %s82, 1
      %p86 = scmp.eq.s32.totalorder %s27, 1
      %p87 = scmp.ne.s32.totalorder %s82, %s84
      %p88 = scmp.eq.s32.totalorder %s27, 0
      %p89 = por %p87, %p88
      %p90 = scmp.ne.s32.totalorder %s82, %s84
      %p91 = scmp.eq.s32.totalorder %s32, 1
      %p92 = por %p90, %p91
      %p93 = scmp.ne.s32.totalorder %s84, %s85
      %p94 = scmp.eq.s32.totalorder %s32, 0
      %p95 = por %p93, %p94
      %p96 = scmp.ne.s32.totalorder %s84, %s85
      %p97 = scmp.eq.s32.totalorder %s33, 1
      %p98 = por %p96, %p97
      %p100 = scmp.ne.s32.totalorder %s85, %s99
      %p101 = scmp.eq.s32.totalorder %s33, 0
      %p102 = por %p100, %p101
      %s104 = sadd.s32 %s103, 1
      %p107 = scmp.eq.s32.totalorder %s27, 1
      %p108 = scmp.ne.s32.totalorder %s103, %s105
      %p109 = scmp.eq.s32.totalorder %s27, 0
      %p110 = por %p108, %p109
      %p111 = scmp.ne.s32.totalorder %s103, %s105
      %p112 = scmp.eq.s32.totalorder %s32, 1
      %p113 = por %p111, %p112
      %p114 = scmp.ne.s32.totalorder %s105, %s106
      %p115 = scmp.eq.s32.totalorder %s32, 0
      %p116 = por %p114, %p115
      %p117 = scmp.ne.s32.totalorder %s105, %s106
      %p118 = scmp.eq.s32.totalorder %s33, 1
      %p119 = por %p117, %p118
      %p121 = scmp.ne.s32.totalorder %s106, %s120
      %p122 = scmp.eq.s32.totalorder %s33, 0
      %p123 = por %p121, %p122
      %s125 = sadd.s32 %s124, 1
      %p128 = scmp.eq.s32.totalorder %s27, 1
      %p129 = scmp.ne.s32.totalorder %s124, %s126
      %p130 = scmp.eq.s32.totalorder %s27, 0
      %p131 = por %p129, %p130
      %p132 = scmp.ne.s32.totalorder %s124, %s126
      %p133 = scmp.eq.s32.totalorder %s32, 1
      %p134 = por %p132, %p133
      %p135 = scmp.ne.s32.totalorder %s126, %s127
      %p136 = scmp.eq.s32.totalorder %s32, 0
      %p137 = por %p135, %p136
      %p138 = scmp.ne.s32.totalorder %s126, %s127
      %p139 = scmp.eq.s32.totalorder %s33, 1
      %p140 = por %p138, %p139
      %p142 = scmp.ne.s32.totalorder %s127, %s141
      %p143 = scmp.eq.s32.totalorder %s33, 0
      %p144 = por %p142, %p143
      %s146 = sadd.s32 %s145, 1
      %p149 = scmp.eq.s32.totalorder %s27, 1
      %p150 = scmp.ne.s32.totalorder %s145, %s147
      %p151 = scmp.eq.s32.totalorder %s27, 0
      %p152 = por %p150, %p151
      %p153 = scmp.ne.s32.totalorder %s145, %s147
      %p154 = scmp.eq.s32.totalorder %s32, 1
      %p155 = por %p153, %p154
      %p156 = scmp.ne.s32.totalorder %s147, %s148
      %p157 = scmp.eq.s32.totalorder %s32, 0
      %p158 = por %p156, %p157
      %p159 = scmp.ne.s32.totalorder %s147, %s148
      %p160 = scmp.eq.s32.totalorder %s33, 1
      %p161 = por %p159, %p160
      %p163 = scmp.ne.s32.totalorder %s148, %s162
      %p164 = scmp.eq.s32.totalorder %s33, 0
      %p165 = por %p163, %p164
      %s167 = sadd.s32 %s166, 1
      %p170 = scmp.eq.s32.totalorder %s27, 1
      %p171 = scmp.ne.s32.totalorder %s166, %s168
      %p172 = scmp.eq.s32.totalorder %s27, 0
      %p173 = por %p171, %p172
      %p174 = scmp.ne.s32.totalorder %s166, %s168
      %p175 = scmp.eq.s32.totalorder %s32, 1
      %p176 = por %p174, %p175
      %p177 = scmp.ne.s32.totalorder %s168, %s169
      %p178 = scmp.eq.s32.totalorder %s32, 0
      %p179 = por %p177, %p178
      %p180 = scmp.ne.s32.totalorder %s168, %s169
      %p181 = scmp.eq.s32.totalorder %s33, 1
      %p182 = por %p180, %p181
      %p184 = scmp.ne.s32.totalorder %s169, %s183
      %p185 = scmp.eq.s32.totalorder %s33, 0
      %p186 = por %p184, %p185
      %s188 = sadd.s32 %s187, 1
      %p191 = scmp.eq.s32.totalorder %s27, 1
      %p192 = scmp.ne.s32.totalorder %s187, %s189
      %p193 = scmp.eq.s32.totalorder %s27, 0
      %p194 = por %p192, %p193
      %p195 = scmp.ne.s32.totalorder %s187, %s189
      %p196 = scmp.eq.s32.totalorder %s32, 1
      %p197 = por %p195, %p196
      %p198 = scmp.ne.s32.totalorder %s189, %s190
      %p199 = scmp.eq.s32.totalorder %s32, 0
      %p200 = por %p198, %p199
      %p201 = scmp.ne.s32.totalorder %s189, %s190
      %p202 = scmp.eq.s32.totalorder %s33, 1
      %p203 = por %p201, %p202
      %p205 = scmp.ne.s32.totalorder %s190, %s204
      %p206 = scmp.eq.s32.totalorder %s33, 0
      %p207 = por %p205, %p206
      %s209 = sadd.s32 %s208, 1
      %p212 = scmp.eq.s32.totalorder %s27, 1
      %p213 = scmp.ne.s32.totalorder %s208, %s210
      %p214 = scmp.eq.s32.totalorder %s27, 0
      %p215 = por %p213, %p214
      %p216 = scmp.ne.s32.totalorder %s208, %s210
      %p217 = scmp.eq.s32.totalorder %s32, 1
      %p218 = por %p216, %p217
      %p219 = scmp.ne.s32.totalorder %s210, %s211
      %p220 = scmp.eq.s32.totalorder %s32, 0
      %p221 = por %p219, %p220
      %p222 = scmp.ne.s32.totalorder %s210, %s211
      %p223 = scmp.eq.s32.totalorder %s33, 1
      %p224 = por %p222, %p223
      %p226 = scmp.ne.s32.totalorder %s211, %s225
      %p227 = scmp.eq.s32.totalorder %s33, 0
      %p228 = por %p226, %p227
      %s230 = sadd.s32 %s229, 1
      %p233 = scmp.eq.s32.totalorder %s27, 1
      %p234 = scmp.ne.s32.totalorder %s229, %s231
      %p235 = scmp.eq.s32.totalorder %s27, 0
      %p236 = por %p234, %p235
      %p237 = scmp.ne.s32.totalorder %s229, %s231
      %p238 = scmp.eq.s32.totalorder %s32, 1
      %p239 = por %p237, %p238
      %p240 = scmp.ne.s32.totalorder %s231, %s232
      %p241 = scmp.eq.s32.totalorder %s32, 0
      %p242 = por %p240, %p241
      %p243 = scmp.ne.s32.totalorder %s231, %s232
      %p244 = scmp.eq.s32.totalorder %s33, 1
      %p245 = por %p243, %p244
      %p247 = scmp.ne.s32.totalorder %s232, %s246
      %p248 = scmp.eq.s32.totalorder %s33, 0
      %p249 = por %p247, %p248
      %s251 = sadd.s32 %s250, 1
      %p254 = scmp.eq.s32.totalorder %s27, 1
      %p255 = scmp.ne.s32.totalorder %s250, %s252
      %p256 = scmp.eq.s32.totalorder %s27, 0
      %p257 = por %p255, %p256
      %p258 = scmp.ne.s32.totalorder %s250, %s252
      %p259 = scmp.eq.s32.totalorder %s32, 1
      %p260 = por %p258, %p259
      %p261 = scmp.ne.s32.totalorder %s252, %s253
      %p262 = scmp.eq.s32.totalorder %s32, 0
      %p263 = por %p261, %p262
      %p264 = scmp.ne.s32.totalorder %s252, %s253
      %p265 = scmp.eq.s32.totalorder %s33, 1
      %p266 = por %p264, %p265
      %p268 = scmp.ne.s32.totalorder %s253, %s267
      %p269 = scmp.eq.s32.totalorder %s33, 0
      %p270 = por %p268, %p269
      %s272 = sadd.s32 %s271, 1
      %p275 = scmp.eq.s32.totalorder %s27, 1
      %p276 = scmp.ne.s32.totalorder %s271, %s273
      %p277 = scmp.eq.s32.totalorder %s27, 0
      %p278 = por %p276, %p277
      %p279 = scmp.ne.s32.totalorder %s271, %s273
      %p280 = scmp.eq.s32.totalorder %s32, 1
      %p281 = por %p279, %p280
      %p282 = scmp.ne.s32.totalorder %s273, %s274
      %p283 = scmp.eq.s32.totalorder %s32, 0
      %p284 = por %p282, %p283
      %p285 = scmp.ne.s32.totalorder %s273, %s274
      %p286 = scmp.eq.s32.totalorder %s33, 1
      %p287 = por %p285, %p286
      %p289 = scmp.ne.s32.totalorder %s274, %s288
      %p290 = scmp.eq.s32.totalorder %s33, 0
      %p291 = por %p289, %p290
      %s293 = sadd.s32 %s292, 1
      %p296 = scmp.eq.s32.totalorder %s27, 1
      %p297 = scmp.ne.s32.totalorder %s292, %s294
      %p298 = scmp.eq.s32.totalorder %s27, 0
      %p299 = por %p297, %p298
      %p300 = scmp.ne.s32.totalorder %s292, %s294
      %p301 = scmp.eq.s32.totalorder %s32, 1
      %p302 = por %p300, %p301
      %p303 = scmp.ne.s32.totalorder %s294, %s295
      %p304 = scmp.eq.s32.totalorder %s32, 0
      %p305 = por %p303, %p304
      %p306 = scmp.ne.s32.totalorder %s294, %s295
      %p307 = scmp.eq.s32.totalorder %s33, 1
      %p308 = por %p306, %p307
      %p310 = scmp.ne.s32.totalorder %s295, %s309
      %p311 = scmp.eq.s32.totalorder %s33, 0
      %p312 = por %p310, %p311
      %s314 = sadd.s32 %s313, 1
      %p317 = scmp.eq.s32.totalorder %s27, 1
      %p318 = scmp.ne.s32.totalorder %s313, %s315
      %p319 = scmp.eq.s32.totalorder %s27, 0
      %p320 = por %p318, %p319
      %p321 = scmp.ne.s32.totalorder %s313, %s315
      %p322 = scmp.eq.s32.totalorder %s32, 1
      %p323 = por %p321, %p322
      %p324 = scmp.ne.s32.totalorder %s315, %s316
      %p325 = scmp.eq.s32.totalorder %s32, 0
      %p326 = por %p324, %p325
      %p327 = scmp.ne.s32.totalorder %s315, %s316
      %p328 = scmp.eq.s32.totalorder %s33, 1
      %p329 = por %p327, %p328
      %p331 = scmp.ne.s32.totalorder %s316, %s330
      %p332 = scmp.eq.s32.totalorder %s33, 0
      %p333 = por %p331, %p332
      %s335 = sadd.s32 %s334, 1
      %p338 = scmp.eq.s32.totalorder %s27, 1
      %p339 = scmp.ne.s32.totalorder %s334, %s336
      %p340 = scmp.eq.s32.totalorder %s27, 0
      %p341 = por %p339, %p340
      %p342 = scmp.ne.s32.totalorder %s334, %s336
      %p343 = scmp.eq.s32.totalorder %s32, 1
      %p344 = por %p342, %p343
      %p345 = scmp.ne.s32.totalorder %s336, %s337
      %p346 = scmp.eq.s32.totalorder %s32, 0
      %p347 = por %p345, %p346
      %p348 = scmp.ne.s32.totalorder %s336, %s337
      %p349 = scmp.eq.s32.totalorder %s33, 1
      %p350 = por %p348, %p349
      %p352 = scmp.ne.s32.totalorder %s337, %s351
      %p353 = scmp.eq.s32.totalorder %s33, 0
      %p354 = por %p352, %p353
      %s356 = sadd.s32 %s355, 1
      %p359 = scmp.eq.s32.totalorder %s27, 1
      %p360 = scmp.ne.s32.totalorder %s355, %s357
      %p361 = scmp.eq.s32.totalorder %s27, 0
      %p362 = por %p360, %p361
      %p363 = scmp.ne.s32.totalorder %s355, %s357
      %p364 = scmp.eq.s32.totalorder %s32, 1
      %p365 = por %p363, %p364
      %p366 = scmp.ne.s32.totalorder %s357, %s358
      %p367 = scmp.eq.s32.totalorder %s32, 0
      %p368 = por %p366, %p367
      %p369 = scmp.ne.s32.totalorder %s357, %s358
      %p370 = scmp.eq.s32.totalorder %s33, 1
      %p371 = por %p369, %p370
      %p373 = scmp.ne.s32.totalorder %s358, %s372
      %p374 = scmp.eq.s32.totalorder %s33, 0
      %p375 = por %p373, %p374
      %s377 = sadd.s32 %s376, 1
      %p380 = scmp.eq.s32.totalorder %s27, 1
      %p381 = scmp.ne.s32.totalorder %s376, %s378
      %p382 = scmp.eq.s32.totalorder %s27, 0
      %p383 = por %p381, %p382
      %p384 = scmp.ne.s32.totalorder %s376, %s378
      %p385 = scmp.eq.s32.totalorder %s32, 1
      %p386 = por %p384, %p385
      %p387 = scmp.ne.s32.totalorder %s378, %s379
      %p388 = scmp.eq.s32.totalorder %s32, 0
      %p389 = por %p387, %p388
      %p390 = scmp.ne.s32.totalorder %s378, %s379
      %p391 = scmp.eq.s32.totalorder %s33, 1
      %p392 = por %p390, %p391
      %p394 = scmp.ne.s32.totalorder %s379, %s393
      %p395 = scmp.eq.s32.totalorder %s33, 0
      %p396 = por %p394, %p395
      %s398 = sadd.s32 %s397, 1
      %p401 = scmp.eq.s32.totalorder %s27, 1
      %p402 = scmp.ne.s32.totalorder %s397, %s399
      %p403 = scmp.eq.s32.totalorder %s27, 0
      %p404 = por %p402, %p403
      %p405 = scmp.ne.s32.totalorder %s397, %s399
      %p406 = scmp.eq.s32.totalorder %s32, 1
      %p407 = por %p405, %p406
      %p408 = scmp.ne.s32.totalorder %s399, %s400
      %p409 = scmp.eq.s32.totalorder %s32, 0
      %p410 = por %p408, %p409
      %p411 = scmp.ne.s32.totalorder %s399, %s400
      %p412 = scmp.eq.s32.totalorder %s33, 1
      %p413 = por %p411, %p412
      %p415 = scmp.ne.s32.totalorder %s400, %s414
      %p416 = scmp.eq.s32.totalorder %s33, 0
      %p417 = por %p415, %p416
      %s418 = ssub.s32 %s27, %s34
      %p419 = scmp.eq.s32.totalorder %s418, 0
      %s421 = sadd.s32 %s420, 1
      %s422 = scalar_select %p419, %s420, %s421
      %p425 = pneg %p419
      %p426 = scmp.eq.s32.totalorder %s27, 1
      %p427 = por %p425, %p426
      %p428 = scmp.ne.s32.totalorder %s420, %s423
      %p429 = scmp.eq.s32.totalorder %s27, 0
      %p430 = por %p428, %p429
      %p431 = scmp.ne.s32.totalorder %s420, %s423
      %p432 = scmp.eq.s32.totalorder %s32, 1
      %p433 = por %p431, %p432
      %p434 = scmp.ne.s32.totalorder %s423, %s424
      %p435 = scmp.eq.s32.totalorder %s32, 0
      %p436 = por %p434, %p435
      %p437 = scmp.ne.s32.totalorder %s423, %s424
      %p438 = scmp.eq.s32.totalorder %s33, 1
      %p439 = por %p437, %p438
      %p441 = scmp.ne.s32.totalorder %s424, %s440
      %p442 = scmp.eq.s32.totalorder %s33, 0
      %p443 = por %p441, %p442
      %p444 = scmp.le.s32.totalorder 1, %s27
      %p445 = scmp.lt.s32.totalorder %s27, 3
      %p446 = pnand %p444, %p445
      %p447 = pneg %p446
      // Predicated region
      $region9: #{tpu_custom_call.1} parent=5 // pred_check
        _
      $region10: #{tpu_custom_call.1} parent=5 // pred_check_branch
        %449 = sbr.rel (%p446) target = $region12
      $region11: #{tpu_custom_call.1} parent=5 // pred_region
        %s450 = ssub.s32 %s27, 1
        // Predicated region
        $region13: #{tpu_custom_call.1} parent=11 // pred_check
          %p451 = pneg %p74
        $region14: #{tpu_custom_call.1} parent=11 // pred_check_branch
          %453 = sbr.rel (%p451) target = $region16
        $region15: #{tpu_custom_call.1} parent=11 // pred_region
          _
        $region16: #{tpu_custom_call.1} parent=11 // pred_fallthru
          _
        // Predicated region
        $region17: #{tpu_custom_call.1} parent=11 // pred_check
          %p454 = pneg %p95
        $region18: #{tpu_custom_call.1} parent=11 // pred_check_branch
          %456 = sbr.rel (%p454) target = $region20
        $region19: #{tpu_custom_call.1} parent=11 // pred_region
          _
        $region20: #{tpu_custom_call.1} parent=11 // pred_fallthru
          _
        // Predicated region
        $region21: #{tpu_custom_call.1} parent=11 // pred_check
          %p457 = pneg %p116
        $region22: #{tpu_custom_call.1} parent=11 // pred_check_branch
          %459 = sbr.rel (%p457) target = $region24
        $region23: #{tpu_custom_call.1} parent=11 // pred_region
          _
        $region24: #{tpu_custom_call.1} parent=11 // pred_fallthru
          _
        // Predicated region
        $region25: #{tpu_custom_call.1} parent=11 // pred_check
          %p460 = pneg %p137
        $region26: #{tpu_custom_call.1} parent=11 // pred_check_branch
          %462 = sbr.rel (%p460) target = $region28
        $region27: #{tpu_custom_call.1} parent=11 // pred_region
          _
        $region28: #{tpu_custom_call.1} parent=11 // pred_fallthru
          _
        // Predicated region
        $region29: #{tpu_custom_call.1} parent=11 // pred_check
          %p463 = pneg %p158
        $region30: #{tpu_custom_call.1} parent=11 // pred_check_branch
          %465 = sbr.rel (%p463) target = $region32
        $region31: #{tpu_custom_call.1} parent=11 // pred_region
          _
        $region32: #{tpu_custom_call.1} parent=11 // pred_fallthru
          _
        // Predicated region
        $region33: #{tpu_custom_call.1} parent=11 // pred_check
          %p466 = pneg %p179
        $region34: #{tpu_custom_call.1} parent=11 // pred_check_branch
          %468 = sbr.rel (%p466) target = $region36
        $region35: #{tpu_custom_call.1} parent=11 // pred_region
          _
        $region36: #{tpu_custom_call.1} parent=11 // pred_fallthru
          _
        // Predicated region
        $region37: #{tpu_custom_call.1} parent=11 // pred_check
          %p469 = pneg %p200
        $region38: #{tpu_custom_call.1} parent=11 // pred_check_branch
          %471 = sbr.rel (%p469) target = $region40
        $region39: #{tpu_custom_call.1} parent=11 // pred_region
          _
        $region40: #{tpu_custom_call.1} parent=11 // pred_fallthru
          _
        // Predicated region
        $region41: #{tpu_custom_call.1} parent=11 // pred_check
          %p472 = pneg %p221
        $region42: #{tpu_custom_call.1} parent=11 // pred_check_branch
          %474 = sbr.rel (%p472) target = $region44
        $region43: #{tpu_custom_call.1} parent=11 // pred_region
          _
        $region44: #{tpu_custom_call.1} parent=11 // pred_fallthru
          _
        // Predicated region
        $region45: #{tpu_custom_call.1} parent=11 // pred_check
          %p475 = pneg %p242
        $region46: #{tpu_custom_call.1} parent=11 // pred_check_branch
          %477 = sbr.rel (%p475) target = $region48
        $region47: #{tpu_custom_call.1} parent=11 // pred_region
          _
        $region48: #{tpu_custom_call.1} parent=11 // pred_fallthru
          _
        // Predicated region
        $region49: #{tpu_custom_call.1} parent=11 // pred_check
          %p478 = pneg %p263
        $region50: #{tpu_custom_call.1} parent=11 // pred_check_branch
          %480 = sbr.rel (%p478) target = $region52
        $region51: #{tpu_custom_call.1} parent=11 // pred_region
          _
        $region52: #{tpu_custom_call.1} parent=11 // pred_fallthru
          _
        // Predicated region
        $region53: #{tpu_custom_call.1} parent=11 // pred_check
          %p481 = pneg %p284
        $region54: #{tpu_custom_call.1} parent=11 // pred_check_branch
          %483 = sbr.rel (%p481) target = $region56
        $region55: #{tpu_custom_call.1} parent=11 // pred_region
          _
        $region56: #{tpu_custom_call.1} parent=11 // pred_fallthru
          _
        // Predicated region
        $region57: #{tpu_custom_call.1} parent=11 // pred_check
          %p484 = pneg %p305
        $region58: #{tpu_custom_call.1} parent=11 // pred_check_branch
          %486 = sbr.rel (%p484) target = $region60
        $region59: #{tpu_custom_call.1} parent=11 // pred_region
          _
        $region60: #{tpu_custom_call.1} parent=11 // pred_fallthru
          _
        // Predicated region
        $region61: #{tpu_custom_call.1} parent=11 // pred_check
          %p487 = pneg %p326
        $region62: #{tpu_custom_call.1} parent=11 // pred_check_branch
          %489 = sbr.rel (%p487) target = $region64
        $region63: #{tpu_custom_call.1} parent=11 // pred_region
          _
        $region64: #{tpu_custom_call.1} parent=11 // pred_fallthru
          _
        // Predicated region
        $region65: #{tpu_custom_call.1} parent=11 // pred_check
          %p490 = pneg %p347
        $region66: #{tpu_custom_call.1} parent=11 // pred_check_branch
          %492 = sbr.rel (%p490) target = $region68
        $region67: #{tpu_custom_call.1} parent=11 // pred_region
          _
        $region68: #{tpu_custom_call.1} parent=11 // pred_fallthru
          _
        // Predicated region
        $region69: #{tpu_custom_call.1} parent=11 // pred_check
          %p493 = pneg %p368
        $region70: #{tpu_custom_call.1} parent=11 // pred_check_branch
          %495 = sbr.rel (%p493) target = $region72
        $region71: #{tpu_custom_call.1} parent=11 // pred_region
          _
        $region72: #{tpu_custom_call.1} parent=11 // pred_fallthru
          _
        // Predicated region
        $region73: #{tpu_custom_call.1} parent=11 // pred_check
          %p496 = pneg %p389
        $region74: #{tpu_custom_call.1} parent=11 // pred_check_branch
          %498 = sbr.rel (%p496) target = $region76
        $region75: #{tpu_custom_call.1} parent=11 // pred_region
          _
        $region76: #{tpu_custom_call.1} parent=11 // pred_fallthru
          _
        // Predicated region
        $region77: #{tpu_custom_call.1} parent=11 // pred_check
          %p499 = pneg %p410
        $region78: #{tpu_custom_call.1} parent=11 // pred_check_branch
          %501 = sbr.rel (%p499) target = $region80
        $region79: #{tpu_custom_call.1} parent=11 // pred_region
          _
        $region80: #{tpu_custom_call.1} parent=11 // pred_fallthru
          _
      $region12: #{tpu_custom_call.1} parent=5 // pred_fallthru
        _
      %p502 = scmp.lt.s32.totalorder %s27, 2
      // Predicated region
      $region81: #{tpu_custom_call.1} parent=5 // pred_check
        %p503 = pneg %p502
      $region82: #{tpu_custom_call.1} parent=5 // pred_check_branch
        %505 = sbr.rel (%p503) target = $region84
      $region83: #{tpu_custom_call.1} parent=5 // pred_region
        // Predicated region
        $region85: #{tpu_custom_call.1} parent=83 // pred_check
          %p506 = pneg %p47
        $region86: #{tpu_custom_call.1} parent=83 // pred_check_branch
          %508 = sbr.rel (%p506) target = $region88
        $region87: #{tpu_custom_call.1} parent=83 // pred_region
          %p509 = scmp.lt.s32.totalorder %s27, 1
          %s510 = scalar_select %p509, %s27, 1
          %s511 = smul.addr %s510, 8
          %s512 = scalar_lea.vmem %s0, %s511
        $region88: #{tpu_custom_call.1} parent=83 // pred_fallthru
          _
      $region84: #{tpu_custom_call.1} parent=5 // pred_fallthru
        _
      %p513 = scmp.le.s32.totalorder 1, %s27
      %p514 = scmp.lt.s32.totalorder %s27, 3
      %p515 = pnand %p513, %p514
      %p516 = pneg %p515
      // Predicated region
      $region89: #{tpu_custom_call.1} parent=5 // pred_check
        _
      $region90: #{tpu_custom_call.1} parent=5 // pred_check_branch
        %518 = sbr.rel (%p515) target = $region92
      $region91: #{tpu_custom_call.1} parent=5 // pred_region
        %s519 = ssub.s32 %s27, 1
        %p520 = scmp.lt.s32.totalorder %s32, 1
        %s521 = scalar_select %p520, %s32, 1
        %s522 = smul.addr %s521, 8
        %s523 = scalar_lea.vmem %s0, %s522
        %p524 = pneg %p53
        %p525 = pneg %p50
        %p526 = pneg %p74
        %p527 = pneg %p71
        %p528 = pneg %p95
        %p529 = pneg %p92
        %p530 = pneg %p116
        %p531 = pneg %p113
        %p532 = pneg %p137
        %p533 = pneg %p134
        %p534 = pneg %p158
        %p535 = pneg %p155
        %p536 = pneg %p179
        %p537 = pneg %p176
        %p538 = pneg %p200
        %p539 = pneg %p197
        %p540 = pneg %p221
        %p541 = pneg %p218
        %p542 = pneg %p242
        %p543 = pneg %p239
        %p544 = pneg %p263
        %p545 = pneg %p260
        %p546 = pneg %p284
        %p547 = pneg %p281
        %p548 = pneg %p305
        %p549 = pneg %p302
        %p550 = pneg %p326
        %p551 = pneg %p323
        %p552 = pneg %p347
        %p553 = pneg %p344
        %p554 = pneg %p368
        %p555 = pneg %p365
        %p556 = pneg %p389
        %p557 = pneg %p386
        %p558 = pneg %p410
        %p559 = pneg %p407
        %p560 = pneg %p436
        %p561 = pneg %p433
        %s562 = sand.u32 %s423, 1
        %s563 = scalar_lea.sflag [#allocation3], %s562
        %s564 = sand.u32 %s423, 1
        %s565 = scalar_lea.vmem [#allocation2], %s564
        %p566 = scmp.lt.s32.totalorder %s32, 1
        %s567 = scalar_select %p566, %s32, 1
        %s568 = smul.addr %s567, 8
        %s569 = scalar_lea.vmem %s0, %s568
        %v570 = vld [vmem:[%s569] sm:$0xff]
        %v571 = vld [vmem:[%s1] sm:$0xff]
        %v572 = vld [vmem:[%s1 + $0x8] sm:$0xf]
        %v573 = vld [vmem:[%s2] sm:$0x1]
        %v575 = vperm.slane %v573, 0
        %vm577 = vcmask 97280
        %v579 = vsel %vm577, %v570, 0
        %vm581 = vcmask 1043456
        %v583 = vsel %vm581, %v572, 0
        %585 = vmatpush.msra.mxu0 0.0
        %586 = vmatpush.msra.mxu0 0.0
        %587 = vmatpush.msra.mxu0 0.0
        %588 = vmatpush.msra.mxu0 0.0
        %589 = vmatpush.msra.mxu0 0.0
        %590 = vmatpush.msra.mxu0 0.0
        %591 = vmatpush.msra.mxu0 0.0
        %592 = vmatpush.msra.mxu0 0.0
        %593 = vmatpush.msra.mxu0 0.0
        %594 = vmatpush.msra.mxu0 0.0
        %595 = vmatpush.msra.mxu0 0.0
        %596 = vmatpush.msra.mxu0 0.0
        %597 = vmatpush.msra.mxu0 0.0
        %598 = vmatpush.msra.mxu0 0.0
        %599 = vmatpush.msra.mxu0 %v583
        %600 = vmatpush.msra.mxu0 %v571
        %601 = vmatmul.f32.gmra.mxu0 %v579
        %v602 = vpop.f32.mrf.mxu0
        %v603 = vadd.f32 %v575, %v602
        %604 = vdwg.mxu0
        %v605 = vld [vmem:[%s3] sm:$0xff]
        %v606 = vadd.f32 %v603, %v605
        %v607 = vld [vmem:[%s4] sm:$0xff]
        %v608 = vld [vmem:[%s4 + $0x8] sm:$0xff]
        %v609 = vld [vmem:[%s4 + $0x10] sm:$0xff]
        %v610 = vld [vmem:[%s4 + $0x18] sm:$0xff]
        %v611 = vld [vmem:[%s5] sm:$0x1]
        %v613 = vperm.slane %v611, 0
        %vm615 = vcmask 261120
        %v617 = vsel %vm615, %v606, 0
        %619 = vmatpush.msra.mxu0 0.0
        %620 = vmatpush.msra.mxu0 0.0
        %621 = vmatpush.msra.mxu0 0.0
        %622 = vmatpush.msra.mxu0 0.0
        %623 = vmatpush.msra.mxu0 0.0
        %624 = vmatpush.msra.mxu0 0.0
        %625 = vmatpush.msra.mxu0 0.0
        %626 = vmatpush.msra.mxu0 0.0
        %627 = vmatpush.msra.mxu0 0.0
        %628 = vmatpush.msra.mxu0 0.0
        %629 = vmatpush.msra.mxu0 0.0
        %630 = vmatpush.msra.mxu0 0.0
        %631 = vmatpush.msra.mxu0 %v610
        %632 = vmatpush.msra.mxu0 %v609
        %633 = vmatpush.msra.mxu0 %v608
        %634 = vmatpush.msra.mxu0 %v607
        %635 = vmatmul.f32.gmra.mxu0 %v617
        %v636 = vpop.f32.mrf.mxu0
        %v637 = vadd.f32 %v613, %v636
        %638 = vdwg.mxu0
        %640 = vrot.lane.b32.xlu0 %v637, 96
        %v641 = vpop.permute.xlu0 %640
        %vm642 = vcmask 64512
        %v643 = vsel %vm642, %v637, 0
        %v645 = vsel %vm642, %v641, 0
        %647 = vmatpush.xpose.msra.mxu0 0.0
        %648 = vmatpush.xpose.msra.mxu0 0.0
        %649 = vmatpush.xpose.msra.mxu0 0.0
        %650 = vmatpush.xpose.msra.mxu0 0.0
        %651 = vmatpush.xpose.msra.mxu0 0.0
        %652 = vmatpush.xpose.msra.mxu0 0.0
        %653 = vmatpush.xpose.msra.mxu0 0.0
        %654 = vmatpush.xpose.msra.mxu0 0.0
        %655 = vmatpush.xpose.msra.mxu0 0.0
        %656 = vmatpush.xpose.msra.mxu0 0.0
        %657 = vmatpush.xpose.msra.mxu0 0.0
        %658 = vmatpush.xpose.msra.mxu0 0.0
        %659 = vmatpush.xpose.msra.mxu0 0.0
        %660 = vmatpush.xpose.msra.mxu0 0.0
        %661 = vmatpush.xpose.msra.mxu0 0.0
        %662 = vmatpush.xpose.msra.mxu0 %v645
        %663 = vmatmul.f32.gmra.mxu0 %v643
        %v664 = vpop.f32.mrf.mxu0
        %v665 = vadd.f32 0.0, %v664
        %666 = vdwg.mxu0
        %v667 = vmul.f32 %v665, 0.35355338
        %v668 = vsel %vm642, %v667, -inf
        %669 = vmax.xlane.f32.xlu0 %v668
        %v670 = vpop.xlane.xlu0 %669
        %v671 = vsub.f32 %v667, %v670
        %v672 = vmul.f32 %v671, 1.442695
        %v673 = vpow.pop %v672
        %v674 = vsel %vm642, %v673, 0.0
        %675 = vadd.xlane.f32.xlu0 %v674
        %v676 = vpop.xlane.xlu0 %675
        %v677 = vrcp.pop %v676
        %v678 = vmul.f32 %v676, %v677
        %v679 = vsub.f32 1.0, %v678
        %v680 = vmul.f32 %v677, %v679
        %v681 = vadd.f32 %v677, %v680
        %vm682 = vweird.f32 %v676
        %vm683 = vweird.f32 %v677
        %vm684 = vmor %vm682, %vm683
        %v685 = vsel %vm684, %v677, %v681
        %v686 = vand.u32 2147483647, %v676
        %vm687 = vcmp.eq.f32.partialorder %v686, 8.507059e+37
        %v688 = vand.u32 %v676, 2147483648
        %v689 = vor.u32 1.1754944e-38, %v688
        %v690 = vsel %vm687, %v689, %v685
        %v691 = vmul.f32 %v673, %v690
        %692 = vrot.lane.b32.xlu0 %v637, 64
        %v693 = vpop.permute.xlu0 %692
        %v696 = vsel %vm642, %v691, 0
        %698 = vmatpush.msra.mxu0 0.0
        %699 = vmatpush.msra.mxu0 0.0
        %700 = vmatpush.msra.mxu0 0.0
        %701 = vmatpush.msra.mxu0 0.0
        %702 = vmatpush.msra.mxu0 0.0
        %703 = vmatpush.msra.mxu0 0.0
        %704 = vmatpush.msra.mxu0 0.0
        %705 = vmatpush.msra.mxu0 0.0
        %706 = vmatpush.msra.mxu0 0.0
        %707 = vmatpush.msra.mxu0 0.0
        %708 = vmatpush.msra.mxu0 0.0
        %709 = vmatpush.msra.mxu0 0.0
        %710 = vmatpush.msra.mxu0 0.0
        %711 = vmatpush.msra.mxu0 0.0
        %712 = vmatpush.msra.mxu0 0.0
        %713 = vmatpush.msra.mxu0 %v693
        %714 = vmatmul.f32.gmra.mxu0 %v696
        %v715 = vpop.f32.mrf.mxu0
        %v716 = vadd.f32 0.0, %v715
        %717 = vdwg.mxu0
        %718 = vrot.lane.b32.xlu0 %v637, 120
        %v719 = vpop.permute.xlu0 %718
        %720 = vrot.lane.b32.xlu0 %v637, 88
        %v721 = vpop.permute.xlu0 %720
        %v722 = vsel %vm642, %v719, 0
        %v724 = vsel %vm642, %v721, 0
        %726 = vmatpush.xpose.msra.mxu0 0.0
        %727 = vmatpush.xpose.msra.mxu0 0.0
        %728 = vmatpush.xpose.msra.mxu0 0.0
        %729 = vmatpush.xpose.msra.mxu0 0.0
        %730 = vmatpush.xpose.msra.mxu0 0.0
        %731 = vmatpush.xpose.msra.mxu0 0.0
        %732 = vmatpush.xpose.msra.mxu0 0.0
        %733 = vmatpush.xpose.msra.mxu0 0.0
        %734 = vmatpush.xpose.msra.mxu0 0.0
        %735 = vmatpush.xpose.msra.mxu0 0.0
        %736 = vmatpush.xpose.msra.mxu0 0.0
        %737 = vmatpush.xpose.msra.mxu0 0.0
        %738 = vmatpush.xpose.msra.mxu0 0.0
        %739 = vmatpush.xpose.msra.mxu0 0.0
        %740 = vmatpush.xpose.msra.mxu0 0.0
        %741 = vmatpush.xpose.msra.mxu0 %v724
        %742 = vmatmul.f32.gmra.mxu0 %v722
        %v743 = vpop.f32.mrf.mxu0
        %v744 = vadd.f32 0.0, %v743
        %745 = vdwg.mxu0
        %v746 = vmul.f32 %v744, 0.35355338
        %v747 = vsel %vm642, %v746, -inf
        %748 = vmax.xlane.f32.xlu0 %v747
        %v749 = vpop.xlane.xlu0 %748
        %v750 = vsub.f32 %v746, %v749
        %v751 = vmul.f32 %v750, 1.442695
        %v752 = vpow.pop %v751
        %v753 = vsel %vm642, %v752, 0.0
        %754 = vadd.xlane.f32.xlu0 %v753
        %v755 = vpop.xlane.xlu0 %754
        %v756 = vrcp.pop %v755
        %v757 = vmul.f32 %v755, %v756
        %v758 = vsub.f32 1.0, %v757
        %v759 = vmul.f32 %v756, %v758
        %v760 = vadd.f32 %v756, %v759
        %vm761 = vweird.f32 %v755
        %vm762 = vweird.f32 %v756
        %vm763 = vmor %vm761, %vm762
        %v764 = vsel %vm763, %v756, %v760
        %v765 = vand.u32 2147483647, %v755
        %vm766 = vcmp.eq.f32.partialorder %v765, 8.507059e+37
        %v767 = vand.u32 %v755, 2147483648
        %v768 = vor.u32 1.1754944e-38, %v767
        %v769 = vsel %vm766, %v768, %v764
        %v770 = vmul.f32 %v752, %v769
        %771 = vrot.lane.b32.xlu0 %v637, 56
        %v772 = vpop.permute.xlu0 %771
        %v775 = vsel %vm642, %v770, 0
        %777 = vmatpush.msra.mxu0 0.0
        %778 = vmatpush.msra.mxu0 0.0
        %779 = vmatpush.msra.mxu0 0.0
        %780 = vmatpush.msra.mxu0 0.0
        %781 = vmatpush.msra.mxu0 0.0
        %782 = vmatpush.msra.mxu0 0.0
        %783 = vmatpush.msra.mxu0 0.0
        %784 = vmatpush.msra.mxu0 0.0
        %785 = vmatpush.msra.mxu0 0.0
        %786 = vmatpush.msra.mxu0 0.0
        %787 = vmatpush.msra.mxu0 0.0
        %788 = vmatpush.msra.mxu0 0.0
        %789 = vmatpush.msra.mxu0 0.0
        %790 = vmatpush.msra.mxu0 0.0
        %791 = vmatpush.msra.mxu0 0.0
        %792 = vmatpush.msra.mxu0 %v772
        %793 = vmatmul.f32.gmra.mxu0 %v775
        %v794 = vpop.f32.mrf.mxu0
        %v795 = vadd.f32 0.0, %v794
        %796 = vdwg.mxu0
        %797 = vrot.lane.b32.xlu0 %v637, 112
        %v798 = vpop.permute.xlu0 %797
        %799 = vrot.lane.b32.xlu0 %v637, 80
        %v800 = vpop.permute.xlu0 %799
        %v801 = vsel %vm642, %v798, 0
        %v803 = vsel %vm642, %v800, 0
        %805 = vmatpush.xpose.msra.mxu0 0.0
        %806 = vmatpush.xpose.msra.mxu0 0.0
        %807 = vmatpush.xpose.msra.mxu0 0.0
        %808 = vmatpush.xpose.msra.mxu0 0.0
        %809 = vmatpush.xpose.msra.mxu0 0.0
        %810 = vmatpush.xpose.msra.mxu0 0.0
        %811 = vmatpush.xpose.msra.mxu0 0.0
        %812 = vmatpush.xpose.msra.mxu0 0.0
        %813 = vmatpush.xpose.msra.mxu0 0.0
        %814 = vmatpush.xpose.msra.mxu0 0.0
        %815 = vmatpush.xpose.msra.mxu0 0.0
        %816 = vmatpush.xpose.msra.mxu0 0.0
        %817 = vmatpush.xpose.msra.mxu0 0.0
        %818 = vmatpush.xpose.msra.mxu0 0.0
        %819 = vmatpush.xpose.msra.mxu0 0.0
        %820 = vmatpush.xpose.msra.mxu0 %v803
        %821 = vmatmul.f32.gmra.mxu0 %v801
        %v822 = vpop.f32.mrf.mxu0
        %v823 = vadd.f32 0.0, %v822
        %824 = vdwg.mxu0
        %v825 = vmul.f32 %v823, 0.35355338
        %v826 = vsel %vm642, %v825, -inf
        %827 = vmax.xlane.f32.xlu0 %v826
        %v828 = vpop.xlane.xlu0 %827
        %v829 = vsub.f32 %v825, %v828
        %v830 = vmul.f32 %v829, 1.442695
        %v831 = vpow.pop %v830
        %v832 = vsel %vm642, %v831, 0.0
        %833 = vadd.xlane.f32.xlu0 %v832
        %v834 = vpop.xlane.xlu0 %833
        %v835 = vrcp.pop %v834
        %v836 = vmul.f32 %v834, %v835
        %v837 = vsub.f32 1.0, %v836
        %v838 = vmul.f32 %v835, %v837
        %v839 = vadd.f32 %v835, %v838
        %vm840 = vweird.f32 %v834
        %vm841 = vweird.f32 %v835
        %vm842 = vmor %vm840, %vm841
        %v843 = vsel %vm842, %v835, %v839
        %v844 = vand.u32 2147483647, %v834
        %vm845 = vcmp.eq.f32.partialorder %v844, 8.507059e+37
        %v846 = vand.u32 %v834, 2147483648
        %v847 = vor.u32 1.1754944e-38, %v846
        %v848 = vsel %vm845, %v847, %v843
        %v849 = vmul.f32 %v831, %v848
        %850 = vrot.lane.b32.xlu0 %v637, 48
        %v851 = vpop.permute.xlu0 %850
        %v854 = vsel %vm642, %v849, 0
        %856 = vmatpush.msra.mxu0 0.0
        %857 = vmatpush.msra.mxu0 0.0
        %858 = vmatpush.msra.mxu0 0.0
        %859 = vmatpush.msra.mxu0 0.0
        %860 = vmatpush.msra.mxu0 0.0
        %861 = vmatpush.msra.mxu0 0.0
        %862 = vmatpush.msra.mxu0 0.0
        %863 = vmatpush.msra.mxu0 0.0
        %864 = vmatpush.msra.mxu0 0.0
        %865 = vmatpush.msra.mxu0 0.0
        %866 = vmatpush.msra.mxu0 0.0
        %867 = vmatpush.msra.mxu0 0.0
        %868 = vmatpush.msra.mxu0 0.0
        %869 = vmatpush.msra.mxu0 0.0
        %870 = vmatpush.msra.mxu0 0.0
        %871 = vmatpush.msra.mxu0 %v851
        %872 = vmatmul.f32.gmra.mxu0 %v854
        %v873 = vpop.f32.mrf.mxu0
        %v874 = vadd.f32 0.0, %v873
        %875 = vdwg.mxu0
        %876 = vrot.lane.b32.xlu0 %v637, 104
        %v877 = vpop.permute.xlu0 %876
        %878 = vrot.lane.b32.xlu0 %v637, 72
        %v879 = vpop.permute.xlu0 %878
        %v880 = vsel %vm642, %v877, 0
        %v882 = vsel %vm642, %v879, 0
        %884 = vmatpush.xpose.msra.mxu0 0.0
        %885 = vmatpush.xpose.msra.mxu0 0.0
        %886 = vmatpush.xpose.msra.mxu0 0.0
        %887 = vmatpush.xpose.msra.mxu0 0.0
        %888 = vmatpush.xpose.msra.mxu0 0.0
        %889 = vmatpush.xpose.msra.mxu0 0.0
        %890 = vmatpush.xpose.msra.mxu0 0.0
        %891 = vmatpush.xpose.msra.mxu0 0.0
        %892 = vmatpush.xpose.msra.mxu0 0.0
        %893 = vmatpush.xpose.msra.mxu0 0.0
        %894 = vmatpush.xpose.msra.mxu0 0.0
        %895 = vmatpush.xpose.msra.mxu0 0.0
        %896 = vmatpush.xpose.msra.mxu0 0.0
        %897 = vmatpush.xpose.msra.mxu0 0.0
        %898 = vmatpush.xpose.msra.mxu0 0.0
        %899 = vmatpush.xpose.msra.mxu0 %v882
        %900 = vmatmul.f32.gmra.mxu0 %v880
        %v901 = vpop.f32.mrf.mxu0
        %v902 = vadd.f32 0.0, %v901
        %903 = vdwg.mxu0
        %v904 = vmul.f32 %v902, 0.35355338
        %v905 = vsel %vm642, %v904, -inf
        %906 = vmax.xlane.f32.xlu0 %v905
        %v907 = vpop.xlane.xlu0 %906
        %v908 = vsub.f32 %v904, %v907
        %v909 = vmul.f32 %v908, 1.442695
        %v910 = vpow.pop %v909
        %v911 = vsel %vm642, %v910, 0.0
        %912 = vadd.xlane.f32.xlu0 %v911
        %v913 = vpop.xlane.xlu0 %912
        %v914 = vrcp.pop %v913
        %v915 = vmul.f32 %v913, %v914
        %v916 = vsub.f32 1.0, %v915
        %v917 = vmul.f32 %v914, %v916
        %v918 = vadd.f32 %v914, %v917
        %vm919 = vweird.f32 %v913
        %vm920 = vweird.f32 %v914
        %vm921 = vmor %vm919, %vm920
        %v922 = vsel %vm921, %v914, %v918
        %v923 = vand.u32 2147483647, %v913
        %vm924 = vcmp.eq.f32.partialorder %v923, 8.507059e+37
        %v925 = vand.u32 %v913, 2147483648
        %v926 = vor.u32 1.1754944e-38, %v925
        %v927 = vsel %vm924, %v926, %v922
        %v928 = vmul.f32 %v910, %v927
        %929 = vrot.lane.b32.xlu0 %v637, 40
        %v930 = vpop.permute.xlu0 %929
        %v933 = vsel %vm642, %v928, 0
        %935 = vmatpush.msra.mxu0 0.0
        %936 = vmatpush.msra.mxu0 0.0
        %937 = vmatpush.msra.mxu0 0.0
        %938 = vmatpush.msra.mxu0 0.0
        %939 = vmatpush.msra.mxu0 0.0
        %940 = vmatpush.msra.mxu0 0.0
        %941 = vmatpush.msra.mxu0 0.0
        %942 = vmatpush.msra.mxu0 0.0
        %943 = vmatpush.msra.mxu0 0.0
        %944 = vmatpush.msra.mxu0 0.0
        %945 = vmatpush.msra.mxu0 0.0
        %946 = vmatpush.msra.mxu0 0.0
        %947 = vmatpush.msra.mxu0 0.0
        %948 = vmatpush.msra.mxu0 0.0
        %949 = vmatpush.msra.mxu0 0.0
        %950 = vmatpush.msra.mxu0 %v930
        %951 = vmatmul.f32.gmra.mxu0 %v933
        %v952 = vpop.f32.mrf.mxu0
        %v953 = vadd.f32 0.0, %v952
        %954 = vdwg.mxu0
        %956 = vrot.lane.b32.xlu0 %v795, 8
        %v957 = vpop.permute.xlu0 %956
        %960 = vrot.lane.b32.xlu0 %v874, 16
        %v961 = vpop.permute.xlu0 %960
        %964 = vrot.lane.b32.xlu0 %v953, 24
        %v965 = vpop.permute.xlu0 %964
        %v967 = vsel %vm642, %v716, %v957
        %vm968 = vcmask 130048
        %v969 = vsel %vm968, %v967, %v961
        %vm970 = vcmask 195584
        %v971 = vsel %vm970, %v969, %v965
        %v972 = vld [vmem:[%s6] sm:$0xff]
        %v973 = vld [vmem:[%s6 + $0x8] sm:$0xff]
        %v974 = vld [vmem:[%s6 + $0x10] sm:$0xff]
        %v975 = vld [vmem:[%s6 + $0x18] sm:$0xff]
        %v976 = vld [vmem:[%s7] sm:$0x1]
        %v978 = vperm.slane %v976, 0
        %v981 = vsel %vm615, %v971, 0
        %983 = vmatpush.msra.mxu0 0.0
        %984 = vmatpush.msra.mxu0 0.0
        %985 = vmatpush.msra.mxu0 0.0
        %986 = vmatpush.msra.mxu0 0.0
        %987 = vmatpush.msra.mxu0 0.0
        %988 = vmatpush.msra.mxu0 0.0
        %989 = vmatpush.msra.mxu0 0.0
        %990 = vmatpush.msra.mxu0 0.0
        %991 = vmatpush.msra.mxu0 0.0
        %992 = vmatpush.msra.mxu0 0.0
        %993 = vmatpush.msra.mxu0 0.0
        %994 = vmatpush.msra.mxu0 0.0
        %995 = vmatpush.msra.mxu0 %v975
        %996 = vmatpush.msra.mxu0 %v974
        %997 = vmatpush.msra.mxu0 %v973
        %998 = vmatpush.msra.mxu0 %v972
        %999 = vmatmul.f32.gmra.mxu0 %v981
        %v1000 = vpop.f32.mrf.mxu0
        %v1001 = vadd.f32 %v978, %v1000
        %1002 = vdwg.mxu0
        %v1003 = vadd.f32 %v606, %v1001
        %v1004 = vld [vmem:[%s8] sm:$0x1]
        %v1005 = vld [vmem:[%s9] sm:$0x1]
        %v1006 = vsel %vm615, %v1003, 0.0
        %1007 = vadd.xlane.f32.xlu0 %v1006
        %v1008 = vpop.xlane.xlu0 %1007
        %v1009 = vrcp.pop 32.0
        %v1010 = vmul.f32 32.0, %v1009
        %v1011 = vsub.f32 1.0, %v1010
        %v1012 = vmul.f32 %v1009, %v1011
        %v1013 = vadd.f32 %v1009, %v1012
        %vm1014 = vweird.f32 %v1009
        %v1015 = vsel %vm1014, %v1009, %v1013
        %v1016 = vmul.f32 %v1008, %v1015
        %v1017 = vmul.f32 %v1003, %v1003
        %v1018 = vsel %vm615, %v1017, 0.0
        %1019 = vadd.xlane.f32.xlu0 %v1018
        %v1020 = vpop.xlane.xlu0 %1019
        %v1021 = vmul.f32 %v1020, %v1015
        %v1022 = vsub.f32 %v1003, %v1016
        %v1023 = vmul.f32 %v1016, %v1016
        %v1024 = vsub.f32 %v1021, %v1023
        %v1025 = vadd.f32 %v1024, 1e-05
        %v1026 = vrsqrt.pop %v1025
        %v1027 = vmul.f32 %v1026, %v1025
        %v1028 = vmul.f32 %v1027, %v1026
        %v1029 = vmul.f32 0.5, %v1028
        %v1030 = vsub.f32 1.5, %v1029
        %v1031 = vmul.f32 %v1026, %v1030
        %vm1032 = vweird.f32 %v1025
        %vm1033 = vweird.f32 %v1026
        %vm1034 = vmor %vm1032, %vm1033
        %v1035 = vsel %vm1034, %v1026, %v1031
        %v1036 = vmul.f32 %v1022, %v1035
        %v1038 = vperm.slane %v1004, 0
        %v1040 = vmul.f32 %v1036, %v1038
        %v1042 = vperm.slane %v1005, 0
        %v1044 = vadd.f32 %v1040, %v1042
        %v1045 = vld [vmem:[%s10] sm:$0xff]
        %v1046 = vld [vmem:[%s10 + $0x8] sm:$0xff]
        %v1047 = vld [vmem:[%s10 + $0x10] sm:$0xff]
        %v1048 = vld [vmem:[%s10 + $0x18] sm:$0xff]
        %v1049 = vld [vmem:[%s11] sm:$0x1]
        %v1051 = vperm.slane %v1049, 0
        %v1054 = vsel %vm615, %v1044, 0
        %1056 = vmatpush.msra.mxu0 0.0
        %1057 = vmatpush.msra.mxu0 0.0
        %1058 = vmatpush.msra.mxu0 0.0
        %1059 = vmatpush.msra.mxu0 0.0
        %1060 = vmatpush.msra.mxu0 0.0
        %1061 = vmatpush.msra.mxu0 0.0
        %1062 = vmatpush.msra.mxu0 0.0
        %1063 = vmatpush.msra.mxu0 0.0
        %1064 = vmatpush.msra.mxu0 0.0
        %1065 = vmatpush.msra.mxu0 0.0
        %1066 = vmatpush.msra.mxu0 0.0
        %1067 = vmatpush.msra.mxu0 0.0
        %1068 = vmatpush.msra.mxu0 %v1048
        %1069 = vmatpush.msra.mxu0 %v1047
        %1070 = vmatpush.msra.mxu0 %v1046
        %1071 = vmatpush.msra.mxu0 %v1045
        %1072 = vmatmul.f32.gmra.mxu0 %v1054
        %v1073 = vpop.f32.mrf.mxu0
        %v1074 = vadd.f32 %v1051, %v1073
        %1075 = vdwg.mxu0
        %v1076 = vmax.f32 %v1074, 0.0
        %v1077 = vld [vmem:[%s12] sm:$0xff]
        %v1078 = vld [vmem:[%s12 + $0x8] sm:$0xff]
        %v1079 = vld [vmem:[%s12 + $0x10] sm:$0xff]
        %v1080 = vld [vmem:[%s12 + $0x18] sm:$0xff]
        %v1081 = vld [vmem:[%s12 + $0x20] sm:$0xff]
        %v1082 = vld [vmem:[%s12 + $0x28] sm:$0xff]
        %v1083 = vld [vmem:[%s12 + $0x30] sm:$0xff]
        %v1084 = vld [vmem:[%s12 + $0x38] sm:$0xff]
        %v1085 = vld [vmem:[%s12 + $0x40] sm:$0xff]
        %v1086 = vld [vmem:[%s12 + $0x48] sm:$0xff]
        %v1087 = vld [vmem:[%s12 + $0x50] sm:$0xff]
        %v1088 = vld [vmem:[%s12 + $0x58] sm:$0xff]
        %v1089 = vld [vmem:[%s12 + $0x60] sm:$0xff]
        %v1090 = vld [vmem:[%s12 + $0x68] sm:$0xff]
        %v1091 = vld [vmem:[%s12 + $0x70] sm:$0xff]
        %v1092 = vld [vmem:[%s12 + $0x78] sm:$0xff]
        %v1093 = vld [vmem:[%s13] sm:$0x1]
        %v1095 = vperm.slane %v1093, 0
        %1097 = vmatpush.msra.mxu0 %v1092
        %1098 = vmatpush.msra.mxu0 %v1091
        %1099 = vmatpush.msra.mxu0 %v1090
        %1100 = vmatpush.msra.mxu0 %v1089
        %1101 = vmatpush.msra.mxu0 %v1088
        %1102 = vmatpush.msra.mxu0 %v1087
        %1103 = vmatpush.msra.mxu0 %v1086
        %1104 = vmatpush.msra.mxu0 %v1085
        %1105 = vmatpush.msra.mxu0 %v1084
        %1106 = vmatpush.msra.mxu0 %v1083
        %1107 = vmatpush.msra.mxu0 %v1082
        %1108 = vmatpush.msra.mxu0 %v1081
        %1109 = vmatpush.msra.mxu0 %v1080
        %1110 = vmatpush.msra.mxu0 %v1079
        %1111 = vmatpush.msra.mxu0 %v1078
        %1112 = vmatpush.msra.mxu0 %v1077
        %1113 = vmatmul.f32.gmra.mxu0 %v1076
        %v1114 = vpop.f32.mrf.mxu0
        %v1115 = vadd.f32 %v1095, %v1114
        %1116 = vdwg.mxu0
        %v1117 = vadd.f32 %v1044, %v1115
        %v1118 = vld [vmem:[%s14] sm:$0x1]
        %v1119 = vld [vmem:[%s15] sm:$0x1]
        %v1120 = vsel %vm615, %v1117, 0.0
        %1121 = vadd.xlane.f32.xlu0 %v1120
        %v1122 = vpop.xlane.xlu0 %1121
        %v1123 = vmul.f32 %v1122, %v1015
        %v1124 = vmul.f32 %v1117, %v1117
        %v1125 = vsel %vm615, %v1124, 0.0
        %1126 = vadd.xlane.f32.xlu0 %v1125
        %v1127 = vpop.xlane.xlu0 %1126
        %v1128 = vmul.f32 %v1127, %v1015
        %v1129 = vsub.f32 %v1117, %v1123
        %v1130 = vmul.f32 %v1123, %v1123
        %v1131 = vsub.f32 %v1128, %v1130
        %v1132 = vadd.f32 %v1131, 1e-05
        %v1133 = vrsqrt.pop %v1132
        %v1134 = vmul.f32 %v1133, %v1132
        %v1135 = vmul.f32 %v1134, %v1133
        %v1136 = vmul.f32 0.5, %v1135
        %v1137 = vsub.f32 1.5, %v1136
        %v1138 = vmul.f32 %v1133, %v1137
        %vm1139 = vweird.f32 %v1132
        %vm1140 = vweird.f32 %v1133
        %vm1141 = vmor %vm1139, %vm1140
        %v1142 = vsel %vm1141, %v1133, %v1138
        %v1143 = vmul.f32 %v1129, %v1142
        %v1145 = vperm.slane %v1118, 0
        %v1147 = vmul.f32 %v1143, %v1145
        %v1149 = vperm.slane %v1119, 0
        %v1151 = vadd.f32 %v1147, %v1149
        %s1152 = scalar_lea.vmem %s4, 32
        %v1153 = vld [vmem:[%s1152] sm:$0xff]
        %v1154 = vld [vmem:[%s1152 + $0x8] sm:$0xff]
        %v1155 = vld [vmem:[%s1152 + $0x10] sm:$0xff]
        %v1156 = vld [vmem:[%s1152 + $0x18] sm:$0xff]
        %s1157 = scalar_lea.vmem %s5, 1
        %v1158 = vld [vmem:[%s1157] sm:$0x1]
        %v1160 = vperm.slane %v1158, 0
        %v1163 = vsel %vm615, %v1151, 0
        %1165 = vmatpush.msra.mxu0 0.0
        %1166 = vmatpush.msra.mxu0 0.0
        %1167 = vmatpush.msra.mxu0 0.0
        %1168 = vmatpush.msra.mxu0 0.0
        %1169 = vmatpush.msra.mxu0 0.0
        %1170 = vmatpush.msra.mxu0 0.0
        %1171 = vmatpush.msra.mxu0 0.0
        %1172 = vmatpush.msra.mxu0 0.0
        %1173 = vmatpush.msra.mxu0 0.0
        %1174 = vmatpush.msra.mxu0 0.0
        %1175 = vmatpush.msra.mxu0 0.0
        %1176 = vmatpush.msra.mxu0 0.0
        %1177 = vmatpush.msra.mxu0 %v1156
        %1178 = vmatpush.msra.mxu0 %v1155
        %1179 = vmatpush.msra.mxu0 %v1154
        %1180 = vmatpush.msra.mxu0 %v1153
        %1181 = vmatmul.f32.gmra.mxu0 %v1163
        %v1182 = vpop.f32.mrf.mxu0
        %v1183 = vadd.f32 %v1160, %v1182
        %1184 = vdwg.mxu0
        %1186 = vrot.lane.b32.xlu0 %v1183, 96
        %v1187 = vpop.permute.xlu0 %1186
        %v1188 = vsel %vm642, %v1183, 0
        %v1190 = vsel %vm642, %v1187, 0
        %1192 = vmatpush.xpose.msra.mxu0 0.0
        %1193 = vmatpush.xpose.msra.mxu0 0.0
        %1194 = vmatpush.xpose.msra.mxu0 0.0
        %1195 = vmatpush.xpose.msra.mxu0 0.0
        %1196 = vmatpush.xpose.msra.mxu0 0.0
        %1197 = vmatpush.xpose.msra.mxu0 0.0
        %1198 = vmatpush.xpose.msra.mxu0 0.0
        %1199 = vmatpush.xpose.msra.mxu0 0.0
        %1200 = vmatpush.xpose.msra.mxu0 0.0
        %1201 = vmatpush.xpose.msra.mxu0 0.0
        %1202 = vmatpush.xpose.msra.mxu0 0.0
        %1203 = vmatpush.xpose.msra.mxu0 0.0
        %1204 = vmatpush.xpose.msra.mxu0 0.0
        %1205 = vmatpush.xpose.msra.mxu0 0.0
        %1206 = vmatpush.xpose.msra.mxu0 0.0
        %1207 = vmatpush.xpose.msra.mxu0 %v1190
        %1208 = vmatmul.f32.gmra.mxu0 %v1188
        %v1209 = vpop.f32.mrf.mxu0
        %v1210 = vadd.f32 0.0, %v1209
        %1211 = vdwg.mxu0
        %v1212 = vmul.f32 %v1210, 0.35355338
        %v1213 = vsel %vm642, %v1212, -inf
        %1214 = vmax.xlane.f32.xlu0 %v1213
        %v1215 = vpop.xlane.xlu0 %1214
        %v1216 = vsub.f32 %v1212, %v1215
        %v1217 = vmul.f32 %v1216, 1.442695
        %v1218 = vpow.pop %v1217
        %v1219 = vsel %vm642, %v1218, 0.0
        %1220 = vadd.xlane.f32.xlu0 %v1219
        %v1221 = vpop.xlane.xlu0 %1220
        %v1222 = vrcp.pop %v1221
        %v1223 = vmul.f32 %v1221, %v1222
        %v1224 = vsub.f32 1.0, %v1223
        %v1225 = vmul.f32 %v1222, %v1224
        %v1226 = vadd.f32 %v1222, %v1225
        %vm1227 = vweird.f32 %v1221
        %vm1228 = vweird.f32 %v1222
        %vm1229 = vmor %vm1227, %vm1228
        %v1230 = vsel %vm1229, %v1222, %v1226
        %v1231 = vand.u32 2147483647, %v1221
        %vm1232 = vcmp.eq.f32.partialorder %v1231, 8.507059e+37
        %v1233 = vand.u32 %v1221, 2147483648
        %v1234 = vor.u32 1.1754944e-38, %v1233
        %v1235 = vsel %vm1232, %v1234, %v1230
        %v1236 = vmul.f32 %v1218, %v1235
        %1237 = vrot.lane.b32.xlu0 %v1183, 64
        %v1238 = vpop.permute.xlu0 %1237
        %v1241 = vsel %vm642, %v1236, 0
        %1243 = vmatpush.msra.mxu0 0.0
        %1244 = vmatpush.msra.mxu0 0.0
        %1245 = vmatpush.msra.mxu0 0.0
        %1246 = vmatpush.msra.mxu0 0.0
        %1247 = vmatpush.msra.mxu0 0.0
        %1248 = vmatpush.msra.mxu0 0.0
        %1249 = vmatpush.msra.mxu0 0.0
        %1250 = vmatpush.msra.mxu0 0.0
        %1251 = vmatpush.msra.mxu0 0.0
        %1252 = vmatpush.msra.mxu0 0.0
        %1253 = vmatpush.msra.mxu0 0.0
        %1254 = vmatpush.msra.mxu0 0.0
        %1255 = vmatpush.msra.mxu0 0.0
        %1256 = vmatpush.msra.mxu0 0.0
        %1257 = vmatpush.msra.mxu0 0.0
        %1258 = vmatpush.msra.mxu0 %v1238
        %1259 = vmatmul.f32.gmra.mxu0 %v1241
        %v1260 = vpop.f32.mrf.mxu0
        %v1261 = vadd.f32 0.0, %v1260
        %1262 = vdwg.mxu0
        %1263 = vrot.lane.b32.xlu0 %v1183, 120
        %v1264 = vpop.permute.xlu0 %1263
        %1265 = vrot.lane.b32.xlu0 %v1183, 88
        %v1266 = vpop.permute.xlu0 %1265
        %v1267 = vsel %vm642, %v1264, 0
        %v1269 = vsel %vm642, %v1266, 0
        %1271 = vmatpush.xpose.msra.mxu0 0.0
        %1272 = vmatpush.xpose.msra.mxu0 0.0
        %1273 = vmatpush.xpose.msra.mxu0 0.0
        %1274 = vmatpush.xpose.msra.mxu0 0.0
        %1275 = vmatpush.xpose.msra.mxu0 0.0
        %1276 = vmatpush.xpose.msra.mxu0 0.0
        %1277 = vmatpush.xpose.msra.mxu0 0.0
        %1278 = vmatpush.xpose.msra.mxu0 0.0
        %1279 = vmatpush.xpose.msra.mxu0 0.0
        %1280 = vmatpush.xpose.msra.mxu0 0.0
        %1281 = vmatpush.xpose.msra.mxu0 0.0
        %1282 = vmatpush.xpose.msra.mxu0 0.0
        %1283 = vmatpush.xpose.msra.mxu0 0.0
        %1284 = vmatpush.xpose.msra.mxu0 0.0
        %1285 = vmatpush.xpose.msra.mxu0 0.0
        %1286 = vmatpush.xpose.msra.mxu0 %v1269
        %1287 = vmatmul.f32.gmra.mxu0 %v1267
        %v1288 = vpop.f32.mrf.mxu0
        %v1289 = vadd.f32 0.0, %v1288
        %1290 = vdwg.mxu0
        %v1291 = vmul.f32 %v1289, 0.35355338
        %v1292 = vsel %vm642, %v1291, -inf
        %1293 = vmax.xlane.f32.xlu0 %v1292
        %v1294 = vpop.xlane.xlu0 %1293
        %v1295 = vsub.f32 %v1291, %v1294
        %v1296 = vmul.f32 %v1295, 1.442695
        %v1297 = vpow.pop %v1296
        %v1298 = vsel %vm642, %v1297, 0.0
        %1299 = vadd.xlane.f32.xlu0 %v1298
        %v1300 = vpop.xlane.xlu0 %1299
        %v1301 = vrcp.pop %v1300
        %v1302 = vmul.f32 %v1300, %v1301
        %v1303 = vsub.f32 1.0, %v1302
        %v1304 = vmul.f32 %v1301, %v1303
        %v1305 = vadd.f32 %v1301, %v1304
        %vm1306 = vweird.f32 %v1300
        %vm1307 = vweird.f32 %v1301
        %vm1308 = vmor %vm1306, %vm1307
        %v1309 = vsel %vm1308, %v1301, %v1305
        %v1310 = vand.u32 2147483647, %v1300
        %vm1311 = vcmp.eq.f32.partialorder %v1310, 8.507059e+37
        %v1312 = vand.u32 %v1300, 2147483648
        %v1313 = vor.u32 1.1754944e-38, %v1312
        %v1314 = vsel %vm1311, %v1313, %v1309
        %v1315 = vmul.f32 %v1297, %v1314
        %1316 = vrot.lane.b32.xlu0 %v1183, 56
        %v1317 = vpop.permute.xlu0 %1316
        %v1320 = vsel %vm642, %v1315, 0
        %1322 = vmatpush.msra.mxu0 0.0
        %1323 = vmatpush.msra.mxu0 0.0
        %1324 = vmatpush.msra.mxu0 0.0
        %1325 = vmatpush.msra.mxu0 0.0
        %1326 = vmatpush.msra.mxu0 0.0
        %1327 = vmatpush.msra.mxu0 0.0
        %1328 = vmatpush.msra.mxu0 0.0
        %1329 = vmatpush.msra.mxu0 0.0
        %1330 = vmatpush.msra.mxu0 0.0
        %1331 = vmatpush.msra.mxu0 0.0
        %1332 = vmatpush.msra.mxu0 0.0
        %1333 = vmatpush.msra.mxu0 0.0
        %1334 = vmatpush.msra.mxu0 0.0
        %1335 = vmatpush.msra.mxu0 0.0
        %1336 = vmatpush.msra.mxu0 0.0
        %1337 = vmatpush.msra.mxu0 %v1317
        %1338 = vmatmul.f32.gmra.mxu0 %v1320
        %v1339 = vpop.f32.mrf.mxu0
        %v1340 = vadd.f32 0.0, %v1339
        %1341 = vdwg.mxu0
        %1342 = vrot.lane.b32.xlu0 %v1183, 112
        %v1343 = vpop.permute.xlu0 %1342
        %1344 = vrot.lane.b32.xlu0 %v1183, 80
        %v1345 = vpop.permute.xlu0 %1344
        %v1346 = vsel %vm642, %v1343, 0
        %v1348 = vsel %vm642, %v1345, 0
        %1350 = vmatpush.xpose.msra.mxu0 0.0
        %1351 = vmatpush.xpose.msra.mxu0 0.0
        %1352 = vmatpush.xpose.msra.mxu0 0.0
        %1353 = vmatpush.xpose.msra.mxu0 0.0
        %1354 = vmatpush.xpose.msra.mxu0 0.0
        %1355 = vmatpush.xpose.msra.mxu0 0.0
        %1356 = vmatpush.xpose.msra.mxu0 0.0
        %1357 = vmatpush.xpose.msra.mxu0 0.0
        %1358 = vmatpush.xpose.msra.mxu0 0.0
        %1359 = vmatpush.xpose.msra.mxu0 0.0
        %1360 = vmatpush.xpose.msra.mxu0 0.0
        %1361 = vmatpush.xpose.msra.mxu0 0.0
        %1362 = vmatpush.xpose.msra.mxu0 0.0
        %1363 = vmatpush.xpose.msra.mxu0 0.0
        %1364 = vmatpush.xpose.msra.mxu0 0.0
        %1365 = vmatpush.xpose.msra.mxu0 %v1348
        %1366 = vmatmul.f32.gmra.mxu0 %v1346
        %v1367 = vpop.f32.mrf.mxu0
        %v1368 = vadd.f32 0.0, %v1367
        %1369 = vdwg.mxu0
        %v1370 = vmul.f32 %v1368, 0.35355338
        %v1371 = vsel %vm642, %v1370, -inf
        %1372 = vmax.xlane.f32.xlu0 %v1371
        %v1373 = vpop.xlane.xlu0 %1372
        %v1374 = vsub.f32 %v1370, %v1373
        %v1375 = vmul.f32 %v1374, 1.442695
        %v1376 = vpow.pop %v1375
        %v1377 = vsel %vm642, %v1376, 0.0
        %1378 = vadd.xlane.f32.xlu0 %v1377
        %v1379 = vpop.xlane.xlu0 %1378
        %v1380 = vrcp.pop %v1379
        %v1381 = vmul.f32 %v1379, %v1380
        %v1382 = vsub.f32 1.0, %v1381
        %v1383 = vmul.f32 %v1380, %v1382
        %v1384 = vadd.f32 %v1380, %v1383
        %vm1385 = vweird.f32 %v1379
        %vm1386 = vweird.f32 %v1380
        %vm1387 = vmor %vm1385, %vm1386
        %v1388 = vsel %vm1387, %v1380, %v1384
        %v1389 = vand.u32 2147483647, %v1379
        %vm1390 = vcmp.eq.f32.partialorder %v1389, 8.507059e+37
        %v1391 = vand.u32 %v1379, 2147483648
        %v1392 = vor.u32 1.1754944e-38, %v1391
        %v1393 = vsel %vm1390, %v1392, %v1388
        %v1394 = vmul.f32 %v1376, %v1393
        %1395 = vrot.lane.b32.xlu0 %v1183, 48
        %v1396 = vpop.permute.xlu0 %1395
        %v1399 = vsel %vm642, %v1394, 0
        %1401 = vmatpush.msra.mxu0 0.0
        %1402 = vmatpush.msra.mxu0 0.0
        %1403 = vmatpush.msra.mxu0 0.0
        %1404 = vmatpush.msra.mxu0 0.0
        %1405 = vmatpush.msra.mxu0 0.0
        %1406 = vmatpush.msra.mxu0 0.0
        %1407 = vmatpush.msra.mxu0 0.0
        %1408 = vmatpush.msra.mxu0 0.0
        %1409 = vmatpush.msra.mxu0 0.0
        %1410 = vmatpush.msra.mxu0 0.0
        %1411 = vmatpush.msra.mxu0 0.0
        %1412 = vmatpush.msra.mxu0 0.0
        %1413 = vmatpush.msra.mxu0 0.0
        %1414 = vmatpush.msra.mxu0 0.0
        %1415 = vmatpush.msra.mxu0 0.0
        %1416 = vmatpush.msra.mxu0 %v1396
        %1417 = vmatmul.f32.gmra.mxu0 %v1399
        %v1418 = vpop.f32.mrf.mxu0
        %v1419 = vadd.f32 0.0, %v1418
        %1420 = vdwg.mxu0
        %1421 = vrot.lane.b32.xlu0 %v1183, 104
        %v1422 = vpop.permute.xlu0 %1421
        %1423 = vrot.lane.b32.xlu0 %v1183, 72
        %v1424 = vpop.permute.xlu0 %1423
        %v1425 = vsel %vm642, %v1422, 0
        %v1427 = vsel %vm642, %v1424, 0
        %1429 = vmatpush.xpose.msra.mxu0 0.0
        %1430 = vmatpush.xpose.msra.mxu0 0.0
        %1431 = vmatpush.xpose.msra.mxu0 0.0
        %1432 = vmatpush.xpose.msra.mxu0 0.0
        %1433 = vmatpush.xpose.msra.mxu0 0.0
        %1434 = vmatpush.xpose.msra.mxu0 0.0
        %1435 = vmatpush.xpose.msra.mxu0 0.0
        %1436 = vmatpush.xpose.msra.mxu0 0.0
        %1437 = vmatpush.xpose.msra.mxu0 0.0
        %1438 = vmatpush.xpose.msra.mxu0 0.0
        %1439 = vmatpush.xpose.msra.mxu0 0.0
        %1440 = vmatpush.xpose.msra.mxu0 0.0
        %1441 = vmatpush.xpose.msra.mxu0 0.0
        %1442 = vmatpush.xpose.msra.mxu0 0.0
        %1443 = vmatpush.xpose.msra.mxu0 0.0
        %1444 = vmatpush.xpose.msra.mxu0 %v1427
        %1445 = vmatmul.f32.gmra.mxu0 %v1425
        %v1446 = vpop.f32.mrf.mxu0
        %v1447 = vadd.f32 0.0, %v1446
        %1448 = vdwg.mxu0
        %v1449 = vmul.f32 %v1447, 0.35355338
        %v1450 = vsel %vm642, %v1449, -inf
        %1451 = vmax.xlane.f32.xlu0 %v1450
        %v1452 = vpop.xlane.xlu0 %1451
        %v1453 = vsub.f32 %v1449, %v1452
        %v1454 = vmul.f32 %v1453, 1.442695
        %v1455 = vpow.pop %v1454
        %v1456 = vsel %vm642, %v1455, 0.0
        %1457 = vadd.xlane.f32.xlu0 %v1456
        %v1458 = vpop.xlane.xlu0 %1457
        %v1459 = vrcp.pop %v1458
        %v1460 = vmul.f32 %v1458, %v1459
        %v1461 = vsub.f32 1.0, %v1460
        %v1462 = vmul.f32 %v1459, %v1461
        %v1463 = vadd.f32 %v1459, %v1462
        %vm1464 = vweird.f32 %v1458
        %vm1465 = vweird.f32 %v1459
        %vm1466 = vmor %vm1464, %vm1465
        %v1467 = vsel %vm1466, %v1459, %v1463
        %v1468 = vand.u32 2147483647, %v1458
        %vm1469 = vcmp.eq.f32.partialorder %v1468, 8.507059e+37
        %v1470 = vand.u32 %v1458, 2147483648
        %v1471 = vor.u32 1.1754944e-38, %v1470
        %v1472 = vsel %vm1469, %v1471, %v1467
        %v1473 = vmul.f32 %v1455, %v1472
        %1474 = vrot.lane.b32.xlu0 %v1183, 40
        %v1475 = vpop.permute.xlu0 %1474
        %v1478 = vsel %vm642, %v1473, 0
        %1480 = vmatpush.msra.mxu0 0.0
        %1481 = vmatpush.msra.mxu0 0.0
        %1482 = vmatpush.msra.mxu0 0.0
        %1483 = vmatpush.msra.mxu0 0.0
        %1484 = vmatpush.msra.mxu0 0.0
        %1485 = vmatpush.msra.mxu0 0.0
        %1486 = vmatpush.msra.mxu0 0.0
        %1487 = vmatpush.msra.mxu0 0.0
        %1488 = vmatpush.msra.mxu0 0.0
        %1489 = vmatpush.msra.mxu0 0.0
        %1490 = vmatpush.msra.mxu0 0.0
        %1491 = vmatpush.msra.mxu0 0.0
        %1492 = vmatpush.msra.mxu0 0.0
        %1493 = vmatpush.msra.mxu0 0.0
        %1494 = vmatpush.msra.mxu0 0.0
        %1495 = vmatpush.msra.mxu0 %v1475
        %1496 = vmatmul.f32.gmra.mxu0 %v1478
        %v1497 = vpop.f32.mrf.mxu0
        %v1498 = vadd.f32 0.0, %v1497
        %1499 = vdwg.mxu0
        %1501 = vrot.lane.b32.xlu0 %v1340, 8
        %v1502 = vpop.permute.xlu0 %1501
        %1505 = vrot.lane.b32.xlu0 %v1419, 16
        %v1506 = vpop.permute.xlu0 %1505
        %1509 = vrot.lane.b32.xlu0 %v1498, 24
        %v1510 = vpop.permute.xlu0 %1509
        %v1512 = vsel %vm642, %v1261, %v1502
        %v1513 = vsel %vm968, %v1512, %v1506
        %v1514 = vsel %vm970, %v1513, %v1510
        %s1515 = scalar_lea.vmem %s6, 32
        %v1516 = vld [vmem:[%s1515] sm:$0xff]
        %v1517 = vld [vmem:[%s1515 + $0x8] sm:$0xff]
        %v1518 = vld [vmem:[%s1515 + $0x10] sm:$0xff]
        %v1519 = vld [vmem:[%s1515 + $0x18] sm:$0xff]
        %s1520 = scalar_lea.vmem %s7, 1
        %v1521 = vld [vmem:[%s1520] sm:$0x1]
        %v1523 = vperm.slane %v1521, 0
        %v1526 = vsel %vm615, %v1514, 0
        %1528 = vmatpush.msra.mxu0 0.0
        %1529 = vmatpush.msra.mxu0 0.0
        %1530 = vmatpush.msra.mxu0 0.0
        %1531 = vmatpush.msra.mxu0 0.0
        %1532 = vmatpush.msra.mxu0 0.0
        %1533 = vmatpush.msra.mxu0 0.0
        %1534 = vmatpush.msra.mxu0 0.0
        %1535 = vmatpush.msra.mxu0 0.0
        %1536 = vmatpush.msra.mxu0 0.0
        %1537 = vmatpush.msra.mxu0 0.0
        %1538 = vmatpush.msra.mxu0 0.0
        %1539 = vmatpush.msra.mxu0 0.0
        %1540 = vmatpush.msra.mxu0 %v1519
        %1541 = vmatpush.msra.mxu0 %v1518
        %1542 = vmatpush.msra.mxu0 %v1517
        %1543 = vmatpush.msra.mxu0 %v1516
        %1544 = vmatmul.f32.gmra.mxu0 %v1526
        %v1545 = vpop.f32.mrf.mxu0
        %v1546 = vadd.f32 %v1523, %v1545
        %1547 = vdwg.mxu0
        %v1548 = vadd.f32 %v1151, %v1546
        %s1549 = scalar_lea.vmem %s8, 1
        %v1550 = vld [vmem:[%s1549] sm:$0x1]
        %s1551 = scalar_lea.vmem %s9, 1
        %v1552 = vld [vmem:[%s1551] sm:$0x1]
        %v1553 = vsel %vm615, %v1548, 0.0
        %1554 = vadd.xlane.f32.xlu0 %v1553
        %v1555 = vpop.xlane.xlu0 %1554
        %v1556 = vmul.f32 %v1555, %v1015
        %v1557 = vmul.f32 %v1548, %v1548
        %v1558 = vsel %vm615, %v1557, 0.0
        %1559 = vadd.xlane.f32.xlu0 %v1558
        %v1560 = vpop.xlane.xlu0 %1559
        %v1561 = vmul.f32 %v1560, %v1015
        %v1562 = vsub.f32 %v1548, %v1556
        %v1563 = vmul.f32 %v1556, %v1556
        %v1564 = vsub.f32 %v1561, %v1563
        %v1565 = vadd.f32 %v1564, 1e-05
        %v1566 = vrsqrt.pop %v1565
        %v1567 = vmul.f32 %v1566, %v1565
        %v1568 = vmul.f32 %v1567, %v1566
        %v1569 = vmul.f32 0.5, %v1568
        %v1570 = vsub.f32 1.5, %v1569
        %v1571 = vmul.f32 %v1566, %v1570
        %vm1572 = vweird.f32 %v1565
        %vm1573 = vweird.f32 %v1566
        %vm1574 = vmor %vm1572, %vm1573
        %v1575 = vsel %vm1574, %v1566, %v1571
        %v1576 = vmul.f32 %v1562, %v1575
        %v1578 = vperm.slane %v1550, 0
        %v1580 = vmul.f32 %v1576, %v1578
        %v1582 = vperm.slane %v1552, 0
        %v1584 = vadd.f32 %v1580, %v1582
        %s1585 = scalar_lea.vmem %s10, 32
        %v1586 = vld [vmem:[%s1585] sm:$0xff]
        %v1587 = vld [vmem:[%s1585 + $0x8] sm:$0xff]
        %v1588 = vld [vmem:[%s1585 + $0x10] sm:$0xff]
        %v1589 = vld [vmem:[%s1585 + $0x18] sm:$0xff]
        %s1590 = scalar_lea.vmem %s11, 1
        %v1591 = vld [vmem:[%s1590] sm:$0x1]
        %v1593 = vperm.slane %v1591, 0
        %v1596 = vsel %vm615, %v1584, 0
        %1598 = vmatpush.msra.mxu0 0.0
        %1599 = vmatpush.msra.mxu0 0.0
        %1600 = vmatpush.msra.mxu0 0.0
        %1601 = vmatpush.msra.mxu0 0.0
        %1602 = vmatpush.msra.mxu0 0.0
        %1603 = vmatpush.msra.mxu0 0.0
        %1604 = vmatpush.msra.mxu0 0.0
        %1605 = vmatpush.msra.mxu0 0.0
        %1606 = vmatpush.msra.mxu0 0.0
        %1607 = vmatpush.msra.mxu0 0.0
        %1608 = vmatpush.msra.mxu0 0.0
        %1609 = vmatpush.msra.mxu0 0.0
        %1610 = vmatpush.msra.mxu0 %v1589
        %1611 = vmatpush.msra.mxu0 %v1588
        %1612 = vmatpush.msra.mxu0 %v1587
        %1613 = vmatpush.msra.mxu0 %v1586
        %1614 = vmatmul.f32.gmra.mxu0 %v1596
        %v1615 = vpop.f32.mrf.mxu0
        %v1616 = vadd.f32 %v1593, %v1615
        %1617 = vdwg.mxu0
        %v1618 = vmax.f32 %v1616, 0.0
        %s1619 = scalar_lea.vmem %s12, 128
        %v1620 = vld [vmem:[%s1619] sm:$0xff]
        %v1621 = vld [vmem:[%s1619 + $0x8] sm:$0xff]
        %v1622 = vld [vmem:[%s1619 + $0x10] sm:$0xff]
        %v1623 = vld [vmem:[%s1619 + $0x18] sm:$0xff]
        %v1624 = vld [vmem:[%s1619 + $0x20] sm:$0xff]
        %v1625 = vld [vmem:[%s1619 + $0x28] sm:$0xff]
        %v1626 = vld [vmem:[%s1619 + $0x30] sm:$0xff]
        %v1627 = vld [vmem:[%s1619 + $0x38] sm:$0xff]
        %v1628 = vld [vmem:[%s1619 + $0x40] sm:$0xff]
        %v1629 = vld [vmem:[%s1619 + $0x48] sm:$0xff]
        %v1630 = vld [vmem:[%s1619 + $0x50] sm:$0xff]
        %v1631 = vld [vmem:[%s1619 + $0x58] sm:$0xff]
        %v1632 = vld [vmem:[%s1619 + $0x60] sm:$0xff]
        %v1633 = vld [vmem:[%s1619 + $0x68] sm:$0xff]
        %v1634 = vld [vmem:[%s1619 + $0x70] sm:$0xff]
        %v1635 = vld [vmem:[%s1619 + $0x78] sm:$0xff]
        %s1636 = scalar_lea.vmem %s13, 1
        %v1637 = vld [vmem:[%s1636] sm:$0x1]
        %v1639 = vperm.slane %v1637, 0
        %1641 = vmatpush.msra.mxu0 %v1635
        %1642 = vmatpush.msra.mxu0 %v1634
        %1643 = vmatpush.msra.mxu0 %v1633
        %1644 = vmatpush.msra.mxu0 %v1632
        %1645 = vmatpush.msra.mxu0 %v1631
        %1646 = vmatpush.msra.mxu0 %v1630
        %1647 = vmatpush.msra.mxu0 %v1629
        %1648 = vmatpush.msra.mxu0 %v1628
        %1649 = vmatpush.msra.mxu0 %v1627
        %1650 = vmatpush.msra.mxu0 %v1626
        %1651 = vmatpush.msra.mxu0 %v1625
        %1652 = vmatpush.msra.mxu0 %v1624
        %1653 = vmatpush.msra.mxu0 %v1623
        %1654 = vmatpush.msra.mxu0 %v1622
        %1655 = vmatpush.msra.mxu0 %v1621
        %1656 = vmatpush.msra.mxu0 %v1620
        %1657 = vmatmul.f32.gmra.mxu0 %v1618
        %v1658 = vpop.f32.mrf.mxu0
        %v1659 = vadd.f32 %v1639, %v1658
        %1660 = vdwg.mxu0
        %v1661 = vadd.f32 %v1584, %v1659
        %s1662 = scalar_lea.vmem %s14, 1
        %v1663 = vld [vmem:[%s1662] sm:$0x1]
        %s1664 = scalar_lea.vmem %s15, 1
        %v1665 = vld [vmem:[%s1664] sm:$0x1]
        %v1666 = vsel %vm615, %v1661, 0.0
        %1667 = vadd.xlane.f32.xlu0 %v1666
        %v1668 = vpop.xlane.xlu0 %1667
        %v1669 = vmul.f32 %v1668, %v1015
        %v1670 = vmul.f32 %v1661, %v1661
        %v1671 = vsel %vm615, %v1670, 0.0
        %1672 = vadd.xlane.f32.xlu0 %v1671
        %v1673 = vpop.xlane.xlu0 %1672
        %v1674 = vmul.f32 %v1673, %v1015
        %v1675 = vsub.f32 %v1661, %v1669
        %v1676 = vmul.f32 %v1669, %v1669
        %v1677 = vsub.f32 %v1674, %v1676
        %v1678 = vadd.f32 %v1677, 1e-05
        %v1679 = vrsqrt.pop %v1678
        %v1680 = vmul.f32 %v1679, %v1678
        %v1681 = vmul.f32 %v1680, %v1679
        %v1682 = vmul.f32 0.5, %v1681
        %v1683 = vsub.f32 1.5, %v1682
        %v1684 = vmul.f32 %v1679, %v1683
        %vm1685 = vweird.f32 %v1678
        %vm1686 = vweird.f32 %v1679
        %vm1687 = vmor %vm1685, %vm1686
        %v1688 = vsel %vm1687, %v1679, %v1684
        %v1689 = vmul.f32 %v1675, %v1688
        %v1691 = vperm.slane %v1663, 0
        %v1693 = vmul.f32 %v1689, %v1691
        %v1695 = vperm.slane %v1665, 0
        %v1697 = vadd.f32 %v1693, %v1695
        %v1698 = vsel %vm615, %v1697, 0.0
        %v1699 = vrot.slane %v1698, 4
        %v1700 = vadd.f32 %v1698, %v1699
        %v1701 = vrot.slane %v1700, 2
        %v1702 = vadd.f32 %v1700, %v1701
        %v1703 = vrot.slane %v1702, 1
        %v1704 = vadd.f32 %v1702, %v1703
        %v1705 = vrcp.pop 8.0
        %v1706 = vmul.f32 8.0, %v1705
        %v1707 = vsub.f32 1.0, %v1706
        %v1708 = vmul.f32 %v1705, %v1707
        %v1709 = vadd.f32 %v1705, %v1708
        %vm1710 = vweird.f32 %v1705
        %v1711 = vsel %vm1710, %v1705, %v1709
        %v1712 = vmul.f32 %v1704, %v1711
        %v1713 = vld [vmem:[%s16] sm:$0xff]
        %v1714 = vld [vmem:[%s16 + $0x8] sm:$0xff]
        %v1715 = vld [vmem:[%s16 + $0x10] sm:$0xff]
        %v1716 = vld [vmem:[%s16 + $0x18] sm:$0xff]
        %v1717 = vld [vmem:[%s17] sm:$0x1]
        %v1719 = vsel %vm615, %v1712, 0
        %1721 = vmatpush.msra.mxu0 0.0
        %1722 = vmatpush.msra.mxu0 0.0
        %1723 = vmatpush.msra.mxu0 0.0
        %1724 = vmatpush.msra.mxu0 0.0
        %1725 = vmatpush.msra.mxu0 0.0
        %1726 = vmatpush.msra.mxu0 0.0
        %1727 = vmatpush.msra.mxu0 0.0
        %1728 = vmatpush.msra.mxu0 0.0
        %1729 = vmatpush.msra.mxu0 0.0
        %1730 = vmatpush.msra.mxu0 0.0
        %1731 = vmatpush.msra.mxu0 0.0
        %1732 = vmatpush.msra.mxu0 0.0
        %1733 = vmatpush.msra.mxu0 %v1716
        %1734 = vmatpush.msra.mxu0 %v1715
        %1735 = vmatpush.msra.mxu0 %v1714
        %1736 = vmatpush.msra.mxu0 %v1713
        %1737 = vmatmul.f32.gmra.mxu0 %v1719
        %v1738 = vpop.f32.mrf.mxu0
        %v1739 = vadd.f32 %v1717, %v1738
        %1740 = vdwg.mxu0
        %1741 = vst [vmem:[%s565] sm:$0x1] %v1739
        %s1742 = sand.u32 %s423, 1
        %s1743 = scalar_lea.sflag [#allocation3], %s1742
        %s1744 = sand.u32 %s423, 1
        %s1745 = scalar_lea.vmem [#allocation2], %s1744
        // Predicated region
        $region93: #{tpu_custom_call.1} parent=91 // pred_check
          %p1746 = pneg %p433
        $region94: #{tpu_custom_call.1} parent=91 // pred_check_branch
          %1748 = sbr.rel (%p1746) target = $region96
        $region95: #{tpu_custom_call.1} parent=91 // pred_region
          %1750 = vsyncadd %s1743, 0
          %s1751 = scalar_lea.hbm %s18, %s32
          %s1753 = sshll.u32 %s1745, 4
          %s1754 = int_to_ptr.vmem [resolvable:$true] %s1753
          %s1755 = sshll.u32 %s1751, 4
          %s1756 = int_to_ptr.hbm [resolvable:$true] %s1755
          %1758 = dma.vmem_to_hbm [thread:$0]  %s1754, 16, %s1756, %s1743
        $region96: #{tpu_custom_call.1} parent=91 // pred_fallthru
          _
      $region92: #{tpu_custom_call.1} parent=5 // pred_fallthru
        _
      %p1759 = scmp.le.s32.totalorder 2, %s27
      // Predicated region
      $region97: #{tpu_custom_call.1} parent=5 // pred_check
        %p1760 = pneg %p1759
      $region98: #{tpu_custom_call.1} parent=5 // pred_check_branch
        %1762 = sbr.rel (%p1760) target = $region100
      $region99: #{tpu_custom_call.1} parent=5 // pred_region
        %s1763 = ssub.s32 %s27, 2
        // Predicated region
        $region101: #{tpu_custom_call.1} parent=99 // pred_check
          %p1764 = pneg %p439
        $region102: #{tpu_custom_call.1} parent=99 // pred_check_branch
          %1766 = sbr.rel (%p1764) target = $region104
        $region103: #{tpu_custom_call.1} parent=99 // pred_region
          %s1767 = sand.u32 %s424, 1
          %s1768 = scalar_lea.sflag [#allocation3], %s1767
          %s1769 = sand.u32 %s424, 1
          %s1770 = scalar_lea.vmem [#allocation2], %s1769
          %1772 = dma.done %s1768, 16
        $region104: #{tpu_custom_call.1} parent=99 // pred_fallthru
          _
      $region100: #{tpu_custom_call.1} parent=5 // pred_fallthru
        _
    $region6: #{tpu_custom_call.1} parent=1 // loop_footer
      %s31 = sadd.s32 1, %s27
    $region7: #{tpu_custom_call.1} parent=1 // loop_footer_branch
      %26 = sbr.rel target = $region3
    $region8: #{tpu_custom_call.1} parent=1 // loop_exit
      _
    %1773 = vsyncpa [#allocation3], 1
    %s1774 = scalar_lea.sflag [#allocation3], 1
    %1775 = vsyncpa %s1774, 1

</llo_original>
